<compile_context>
chip_gen: v7x
topology: tpu7x:2x2x1
jax: 0.10.0
libtpu: 0.0.40
codegen_flags: <defaults>
</compile_context>

<pallas_src>
import functools

import numpy as np
import jax
import jax.numpy as jnp
from jax import lax
from jax.experimental import pallas as pl
from jax.experimental.pallas import tpu as pltpu

_BIG = 1.0e9   # "no event" sentinel score


def _iou_crop_kernel(boxes_ref, crops_ref, out_ref):
    """Evaluate every (attempt, trial) crop candidate against every box and select
    the sequentially-first passing one.

    boxes_ref: [8, Np]   rows 0..3 = x1,y1,x2,y2 (padded lanes hold -1e9 sentinel)
    crops_ref: [R, 8]    cols = left, top, right, bottom, new_w, new_h, thr, score
                         (score = sequential order a*(T+1)+1+t; _BIG for invalid rows)
    out_ref:   [8, Np]   row 0  : within-crop mask of the winning candidate
                         rows1-4: shifted+clamped x1,y1,x2,y2
                         row 5  : winning score (broadcast; _BIG if nothing passed)
                         rows6-7: zero
    """
    bx = boxes_ref[...]                     # [8, Np]
    cr = crops_ref[...]                     # [R, 8]

    x1 = bx[0:1, :]
    y1 = bx[1:2, :]
    x2 = bx[2:3, :]
    y2 = bx[3:4, :]

    left = cr[:, 0:1]
    top = cr[:, 1:2]
    right = cr[:, 2:3]
    bottom = cr[:, 3:4]
    thr = cr[:, 6:7]
    score = cr[:, 7:8]

    # box centers strictly inside the crop (padded lanes / invalid rows never satisfy this)
    cx = 0.5 * (x1 + x2)
    cy = 0.5 * (y1 + y2)
    within = (left < cx) & (cx < right) & (top < cy) & (cy < bottom)     # [R, Np]
    within_f = within.astype(jnp.float32)

    # division-free IoU threshold:  iou >= thr  <=>  inter >= thr * denom
    # (denom >= crop area > 0 for every geometrically valid crop row).
    area_b = (x2 - x1) * (y2 - y1)                                       # [1, Np]
    area_c = (right - left) * (bottom - top)                             # [R, 1]
    iw = jnp.maximum(jnp.minimum(x2, right) - jnp.maximum(x1, left), 0.0)
    ih = jnp.maximum(jnp.minimum(y2, bottom) - jnp.maximum(y1, top), 0.0)
    inter = iw * ih                                                      # [R, Np]
    denom = area_b + area_c - inter
    ok = within & (inter >= thr * denom)                                 # [R, Np]

    # per-row pass flag; sequentially-first passing row = min score.
    pass_row = jnp.max(ok.astype(jnp.float32), axis=1, keepdims=True) > 0.5   # [R, 1]
    cand = jnp.where(pass_row, score, _BIG)
    best = jnp.min(cand, keepdims=True)                                  # [1, 1]

    # one-hot row selector.  Scores are small distinct integers (<< 2^24),
    # so float32 equality is exact.
    sel = jnp.where((score == best) & pass_row, 1.0, 0.0)                # [R, 1]

    # all selected crop parameters with a single cross-sublane reduction.
    sel_params = jnp.sum(cr * sel, axis=0, keepdims=True)                # [1, 8]
    sel_left = sel_params[:, 0:1]
    sel_top = sel_params[:, 1:2]
    sel_w = sel_params[:, 4:5]
    sel_h = sel_params[:, 5:6]

    within_sel = jnp.sum(within_f * sel, axis=0, keepdims=True)          # [1, Np]

    # boxes[:,0::2] -= left ; clamp(0,new_w)   /   boxes[:,1::2] -= top ; clamp(0,new_h)
    # done as ONE [4, Np] op with [4,1] shift/bound columns (rows 0,2 = x; rows 1,3 = y).
    row_ids = lax.broadcasted_iota(jnp.int32, (4, 1), 0)
    is_x = (row_ids & 1) == 0
    shift = jnp.where(is_x, sel_left, sel_top)                           # [4, 1]
    bound = jnp.where(is_x, sel_w, sel_h)                                # [4, 1]
    clamped = jnp.clip(bx[0:4, :] - shift, 0.0, bound)                   # [4, Np]

    n_pad = bx.shape[1]
    out_ref[0:1, :] = within_sel
    out_ref[1:5, :] = clamped
    out_ref[5:6, :] = jnp.broadcast_to(best, (1, n_pad))
    out_ref[6:8, :] = jnp.zeros((2, n_pad), jnp.float32)


@functools.partial(jax.jit, static_argnames=("orig_w", "orig_h", "cfg"))
def _device_round(boxes_pad, key, *, orig_w, orig_h, cfg):
    """One device round trip: ATTEMPTS option draws x TRIALS crop trials, all built
    on-device in jnp and evaluated/selected by a single Pallas kernel invocation.

    Returns (out_tile [8, Np], decision [5]) with
      decision = [status (0 retry / 1 return-unchanged / 2 crop), left, top, new_w, new_h].
    """
    (min_scale, max_scale, min_ar, max_ar, options, trials, attempts) = cfg
    a_n, t_n = attempts, trials
    n_pad = boxes_pad.shape[1]

    k_opt, k_r = jax.random.split(key)
    opt_arr = jnp.asarray(options, dtype=jnp.float32)
    thr_a = opt_arr[jax.random.randint(k_opt, (a_n,), 0, len(options))]   # [A]
    r = jax.random.uniform(k_r, (a_n, t_n, 4), dtype=jnp.float32)         # [A, T, 4]

    # ---- vectorized crop construction (the reference's per-trial scalar math) ----
    span = max_scale - min_scale
    new_w = jnp.floor(orig_w * (min_scale + span * r[..., 0]))            # [A, T]
    new_h = jnp.floor(orig_h * (min_scale + span * r[..., 1]))
    left = jnp.floor((orig_w - new_w) * r[..., 2])
    top = jnp.floor((orig_h - new_h) * r[..., 3])
    right = left + new_w
    bottom = top + new_h
    # aspect-ratio check without dividing (requires new_h > 0), plus the
    # left==right / top==bottom degeneracy checks (new_w > 0, new_h > 0).
    valid = ((new_h > 0.0) & (new_w > 0.0)
             & (min_ar * new_h <= new_w) & (new_w <= max_ar * new_h))

    # Sequential-order score of trial t inside attempt a (the reference's
    # "while True / for trial" order).  The per-attempt thr>=1.0 "return unchanged"
    # event gets score a*(T+1), i.e. strictly before that attempt's trials.
    a_ids = jnp.arange(a_n, dtype=jnp.float32)[:, None]
    t_ids = jnp.arange(t_n, dtype=jnp.float32)[None, :]
    score = jnp.where(valid, a_ids * (t_n + 1) + 1.0 + t_ids, _BIG)

    zero = jnp.zeros_like(new_w)
    crops = jnp.stack(
        [jnp.where(valid, left, zero), jnp.where(valid, top, zero),
         jnp.where(valid, right, zero), jnp.where(valid, bottom, zero),
         new_w, new_h, jnp.broadcast_to(thr_a[:, None], (a_n, t_n)), score],
        axis=-1).reshape(a_n * t_n, 8)
    rows = a_n * t_n
    rows_pad = -(-rows // 8) * 8                       # sublane-aligned row count
    if rows_pad != rows:
        pad = jnp.zeros((rows_pad - rows, 8), jnp.float32).at[:, 7].set(_BIG)
        crops = jnp.concatenate([crops, pad], axis=0)

    out_tile = pl.pallas_call(
        _iou_crop_kernel,
        grid=(1,),
        in_specs=[pl.BlockSpec((8, n_pad), lambda i: (0, 0)),
                  pl.BlockSpec((rows_pad, 8), lambda i: (0, 0))],
        out_specs=pl.BlockSpec((8, n_pad), lambda i: (0, 0)),
        out_shape=jax.ShapeDtypeStruct((8, n_pad), jnp.float32),
        compiler_params=pltpu.CompilerParams(
            dimension_semantics=("arbitrary",)),
    )(boxes_pad, crops)
    # TODO(synk): if the box count ever grows to many thousands, tile the lane (box)
    # axis with a grid marked "parallel" instead of grid=(1,) (VMEM / megacore concern
    # on v7x & v5e); at Np~128 a single block is optimal.

    # Fold in the per-attempt "min_jaccard_overlap >= 1.0 -> return unchanged" events.
    crop_score = out_tile[5, 0]
    unchanged_score = jnp.min(
        jnp.where(thr_a >= 1.0,
                  jnp.arange(a_n, dtype=jnp.float32) * (t_n + 1), _BIG))
    any_crop = crop_score < 0.5 * _BIG
    any_unchanged = unchanged_score < 0.5 * _BIG
    crop_wins = any_crop & (crop_score < unchanged_score)
    status = jnp.where(crop_wins, 2.0, jnp.where(any_unchanged, 1.0, 0.0))

    # Recover the winning row's crop parameters from the table we just built.
    a_sel = jnp.floor(crop_score / (t_n + 1.0))
    t_sel = crop_score - a_sel * (t_n + 1.0) - 1.0
    row = jnp.clip(a_sel * t_n + t_sel, 0.0, rows - 1.0).astype(jnp.int32)
    sel = crops[row]
    decision = jnp.stack([status, sel[0], sel[1], sel[4], sel[5]])
    return out_tile, decision


class RandomIoUCrop:
    def __init__(self, min_scale=0.3, max_scale=1.0, min_aspect_ratio=0.5,
                 max_aspect_ratio=2.0, sampler_options=None, trials=40,
                 attempts_per_round=8, max_rounds=64):
        self.min_scale = min_scale
        self.max_scale = max_scale
        self.min_aspect_ratio = min_aspect_ratio
        self.max_aspect_ratio = max_aspect_ratio
        if sampler_options is None:
            sampler_options = [0.0, 0.1, 0.3, 0.5, 0.7, 0.9, 1.0]
        self.options = sampler_options
        self.trials = trials
        self.attempts_per_round = attempts_per_round   # option draws batched per device call
        self.max_rounds = max_rounds                   # bounds the reference's `while True`

    def __call__(self, image, target, key):
        if target is None:
            raise ValueError("The targets can't be None for this transform.")
        if image.ndim not in (2, 3):
            raise ValueError(
                "image should be 2/3 dimensional. Got {} dimensions.".format(image.ndim))
        if image.ndim == 2:
            image = image[None, :, :]

        orig_h, orig_w = int(image.shape[-2]), int(image.shape[-1])
        boxes_np = np.asarray(jax.device_get(target["boxes"]), dtype=np.float32)  # [N,4]
        labels_np = np.asarray(jax.device_get(target["labels"]))
        n = boxes_np.shape[0]
        if n == 0:
            # With no boxes no trial can ever pass; the reference only terminates via
            # the thr >= 1.0 draw, returning the input unchanged -- do that directly.
            return image, target

        n_pad = max(128, -(-n // 128) * 128)            # lane-dense box axis
        boxes_pad = np.full((8, n_pad), -1.0e9, dtype=np.float32)
        boxes_pad[0:4, :n] = boxes_np.T
        boxes_dev = jnp.asarray(boxes_pad)              # single H2D for the whole call

        cfg = (float(self.min_scale), float(self.max_scale),
               float(self.min_aspect_ratio), float(self.max_aspect_ratio),
               tuple(float(o) for o in self.options),
               int(self.trials), int(self.attempts_per_round))

        keys = jax.random.split(key, self.max_rounds)
        for rd in range(self.max_rounds):               # bounded "while True"
            out_tile, decision = _device_round(
                boxes_dev, keys[rd], orig_w=orig_w, orig_h=orig_h, cfg=cfg)
            out_np, dec_np = jax.device_get((out_tile, decision))   # one D2H per round
            status = int(round(float(dec_np[0])))
            if status == 0:                             # no attempt terminated -> redraw
                continue
            if status == 1:                             # min_jaccard_overlap >= 1.0 drawn first
                return image, target

            left, top = int(dec_np[1]), int(dec_np[2])
            new_w, new_h = int(dec_np[3]), int(dec_np[4])
            # TODO(synk): boolean-mask filtering yields a dynamic shape; assembled on host.
            keep = np.nonzero(out_np[0, :n] > 0.5)[0]
            new_target = {
                "boxes": jnp.asarray(out_np[1:5, :n].T[keep], dtype=jnp.float32),
                "labels": jnp.asarray(labels_np[keep]),
            }
            # TODO(synk): F.crop has a dynamic output shape -> plain XLA slice, no
            # fixed-shape Pallas equivalent (avoids per-crop Mosaic recompiles).
            cropped = image[:, top:top + new_h, left:left + new_w]
            return cropped, new_target

        # Reference loops forever; bounded here, return unchanged.
        return image, target


if __name__ == "__main__":
    root = jax.random.PRNGKey(0)
    k_img, k_c, k_s, k_lab, k_loop = jax.random.split(root, 5)

    C, H, W = 3, 16, 16
    N = 8
    image = jax.random.uniform(k_img, (C, H, W), dtype=jnp.float32)

    centers = jax.random.uniform(k_c, (N, 2), minval=3.0, maxval=13.0)
    halves = jax.random.uniform(k_s, (N, 2), minval=2.0, maxval=5.0)
    x1y1 = jnp.clip(centers - halves, 0.0, float(W))
    x2y2 = jnp.clip(centers + halves, 0.0, float(W))
    boxes = jnp.concatenate([x1y1, x2y2], axis=1).astype(jnp.float32)   # [N, 4] xyxy
    labels = jax.random.randint(k_lab, (N,), 1, 10, dtype=jnp.int32)
    target = {"boxes": boxes, "labels": labels}

    transform = RandomIoUCrop()
    # The first round always runs the Pallas kernel (n > 0), regardless of which
    # terminal outcome (crop / unchanged) the RNG selects.
    out_image, out_target = transform(image, target, k_loop)

    jax.block_until_ready(out_image)
    jax.block_until_ready(out_target["boxes"])
    jax.block_until_ready(out_target["labels"])
    print("KERNEL_OK")
</pallas_src>

<mosaic_0001>
module attributes {stable_mosaic.version = 11 : i64} {
  func.func @_iou_crop_kernel(%arg0: i32, %arg1: memref<8x128xf32, #tpu.memory_space<vmem>>, %arg2: memref<320x8xf32, #tpu.memory_space<vmem>>, %arg3: memref<8x128xf32, #tpu.memory_space<vmem>>) attributes {dimension_semantics = [#tpu.dimension_semantics<arbitrary>], iteration_bounds = array<i64: 1>, scalar_prefetch = 0 : i64, scratch_operands = 0 : i64, tpu.core_type = #tpu.core_type<tc>, window_params = [{pipeline_mode = #tpu.pipeline_mode<synchronous>, transform_indices = @transform_0, window_bounds = array<i64: 8, 128>}, {pipeline_mode = #tpu.pipeline_mode<synchronous>, transform_indices = @transform_1, window_bounds = array<i64: 320, 8>}, {pipeline_mode = #tpu.pipeline_mode<synchronous>, transform_indices = @transform_2, window_bounds = array<i64: 8, 128>}]} {
    %c0 = arith.constant 0 : index
    %c0_0 = arith.constant 0 : index
    %0 = vector.load %arg1[%c0, %c0_0] : memref<8x128xf32, #tpu.memory_space<vmem>>, vector<8x128xf32>
    %c0_1 = arith.constant 0 : index
    %c0_2 = arith.constant 0 : index
    %1 = vector.load %arg2[%c0_1, %c0_2] : memref<320x8xf32, #tpu.memory_space<vmem>>, vector<320x8xf32>
    %2 = vector.extract_strided_slice %0 {offsets = [0, 0], sizes = [1, 128], strides = [1, 1]} : vector<8x128xf32> to vector<1x128xf32>
    %3 = vector.extract_strided_slice %0 {offsets = [1, 0], sizes = [1, 128], strides = [1, 1]} : vector<8x128xf32> to vector<1x128xf32>
    %4 = vector.extract_strided_slice %0 {offsets = [2, 0], sizes = [1, 128], strides = [1, 1]} : vector<8x128xf32> to vector<1x128xf32>
    %5 = vector.extract_strided_slice %0 {offsets = [3, 0], sizes = [1, 128], strides = [1, 1]} : vector<8x128xf32> to vector<1x128xf32>
    %6 = vector.extract_strided_slice %1 {offsets = [0, 0], sizes = [320, 1], strides = [1, 1]} : vector<320x8xf32> to vector<320x1xf32>
    %7 = vector.extract_strided_slice %1 {offsets = [0, 1], sizes = [320, 1], strides = [1, 1]} : vector<320x8xf32> to vector<320x1xf32>
    %8 = vector.extract_strided_slice %1 {offsets = [0, 2], sizes = [320, 1], strides = [1, 1]} : vector<320x8xf32> to vector<320x1xf32>
    %9 = vector.extract_strided_slice %1 {offsets = [0, 3], sizes = [320, 1], strides = [1, 1]} : vector<320x8xf32> to vector<320x1xf32>
    %10 = vector.extract_strided_slice %1 {offsets = [0, 6], sizes = [320, 1], strides = [1, 1]} : vector<320x8xf32> to vector<320x1xf32>
    %11 = vector.extract_strided_slice %1 {offsets = [0, 7], sizes = [320, 1], strides = [1, 1]} : vector<320x8xf32> to vector<320x1xf32>
    %12 = arith.addf %2, %4 : vector<1x128xf32>
    %cst = arith.constant 5.000000e-01 : f32
    %13 = vector.broadcast %cst : f32 to vector<1x128xf32>
    %14 = arith.mulf %13, %12 : vector<1x128xf32>
    %15 = arith.addf %3, %5 : vector<1x128xf32>
    %cst_3 = arith.constant 5.000000e-01 : f32
    %16 = vector.broadcast %cst_3 : f32 to vector<1x128xf32>
    %17 = arith.mulf %16, %15 : vector<1x128xf32>
    %18 = vector.broadcast %6 : vector<320x1xf32> to vector<320x128xf32>
    %19 = vector.broadcast %14 : vector<1x128xf32> to vector<320x128xf32>
    %20 = arith.cmpf olt, %18, %19 : vector<320x128xf32>
    %21 = vector.broadcast %14 : vector<1x128xf32> to vector<320x128xf32>
    %22 = vector.broadcast %8 : vector<320x1xf32> to vector<320x128xf32>
    %23 = arith.cmpf olt, %21, %22 : vector<320x128xf32>
    %24 = arith.andi %20, %23 : vector<320x128xi1>
    %25 = vector.broadcast %7 : vector<320x1xf32> to vector<320x128xf32>
    %26 = vector.broadcast %17 : vector<1x128xf32> to vector<320x128xf32>
    %27 = arith.cmpf olt, %25, %26 : vector<320x128xf32>
    %28 = arith.andi %24, %27 : vector<320x128xi1>
    %29 = vector.broadcast %17 : vector<1x128xf32> to vector<320x128xf32>
    %30 = vector.broadcast %9 : vector<320x1xf32> to vector<320x128xf32>
    %31 = arith.cmpf olt, %29, %30 : vector<320x128xf32>
    %32 = arith.andi %28, %31 : vector<320x128xi1>
    %33 = arith.extui %32 : vector<320x128xi1> to vector<320x128xi32>
    %34 = arith.sitofp %33 : vector<320x128xi32> to vector<320x128xf32>
    %35 = arith.subf %4, %2 : vector<1x128xf32>
    %36 = arith.subf %5, %3 : vector<1x128xf32>
    %37 = arith.mulf %35, %36 : vector<1x128xf32>
    %38 = arith.subf %8, %6 : vector<320x1xf32>
    %39 = arith.subf %9, %7 : vector<320x1xf32>
    %40 = arith.mulf %38, %39 : vector<320x1xf32>
    %41 = vector.broadcast %4 : vector<1x128xf32> to vector<320x128xf32>
    %42 = vector.broadcast %8 : vector<320x1xf32> to vector<320x128xf32>
    %43 = arith.minimumf %41, %42 : vector<320x128xf32>
    %44 = vector.broadcast %2 : vector<1x128xf32> to vector<320x128xf32>
    %45 = vector.broadcast %6 : vector<320x1xf32> to vector<320x128xf32>
    %46 = arith.maximumf %44, %45 : vector<320x128xf32>
    %47 = arith.subf %43, %46 : vector<320x128xf32>
    %cst_4 = arith.constant 0.000000e+00 : f32
    %48 = vector.broadcast %cst_4 : f32 to vector<320x128xf32>
    %49 = arith.maximumf %47, %48 : vector<320x128xf32>
    %50 = vector.broadcast %5 : vector<1x128xf32> to vector<320x128xf32>
    %51 = vector.broadcast %9 : vector<320x1xf32> to vector<320x128xf32>
    %52 = arith.minimumf %50, %51 : vector<320x128xf32>
    %53 = vector.broadcast %3 : vector<1x128xf32> to vector<320x128xf32>
    %54 = vector.broadcast %7 : vector<320x1xf32> to vector<320x128xf32>
    %55 = arith.maximumf %53, %54 : vector<320x128xf32>
    %56 = arith.subf %52, %55 : vector<320x128xf32>
    %cst_5 = arith.constant 0.000000e+00 : f32
    %57 = vector.broadcast %cst_5 : f32 to vector<320x128xf32>
    %58 = arith.maximumf %56, %57 : vector<320x128xf32>
    %59 = arith.mulf %49, %58 : vector<320x128xf32>
    %60 = vector.broadcast %37 : vector<1x128xf32> to vector<320x128xf32>
    %61 = vector.broadcast %40 : vector<320x1xf32> to vector<320x128xf32>
    %62 = arith.addf %60, %61 : vector<320x128xf32>
    %63 = arith.subf %62, %59 : vector<320x128xf32>
    %64 = vector.broadcast %10 : vector<320x1xf32> to vector<320x128xf32>
    %65 = arith.mulf %64, %63 : vector<320x128xf32>
    %66 = arith.cmpf oge, %59, %65 : vector<320x128xf32>
    %67 = arith.andi %32, %66 : vector<320x128xi1>
    %68 = arith.extui %67 : vector<320x128xi1> to vector<320x128xi32>
    %69 = arith.sitofp %68 : vector<320x128xi32> to vector<320x128xf32>
    %cst_6 = arith.constant dense<0xFF800000> : vector<320xf32>
    %70 = vector.multi_reduction <maximumf>, %69, %cst_6 [1] : vector<320x128xf32> to vector<320xf32>
    %71 = vector.shape_cast %70 : vector<320xf32> to vector<320x1xf32>
    %cst_7 = arith.constant 5.000000e-01 : f32
    %72 = vector.broadcast %cst_7 : f32 to vector<320x1xf32>
    %73 = arith.cmpf ogt, %71, %72 : vector<320x1xf32>
    %cst_8 = arith.constant 1.000000e+09 : f32
    %74 = vector.broadcast %cst_8 : f32 to vector<320x1xf32>
    %75 = arith.select %73, %11, %74 : vector<320x1xi1>, vector<320x1xf32>
    %76 = vector.shape_cast %75 : vector<320x1xf32> to vector<1x320x1xf32>
    %cst_9 = arith.constant dense<0x7F800000> : vector<1xf32>
    %77 = vector.multi_reduction <minimumf>, %76, %cst_9 [1, 2] : vector<1x320x1xf32> to vector<1xf32>
    %78 = vector.shape_cast %77 : vector<1xf32> to vector<1x1x1xf32>
    %79 = vector.extract %78[0, 0, 0] : f32 from vector<1x1x1xf32>
    %80 = vector.broadcast %79 : f32 to vector<1x1xf32>
    %81 = vector.broadcast %80 : vector<1x1xf32> to vector<320x1xf32>
    %82 = arith.cmpf oeq, %11, %81 : vector<320x1xf32>
    %83 = arith.andi %82, %73 : vector<320x1xi1>
    %cst_10 = arith.constant 1.000000e+00 : f32
    %cst_11 = arith.constant 0.000000e+00 : f32
    %84 = vector.broadcast %cst_10 : f32 to vector<320x1xf32>
    %85 = vector.broadcast %cst_11 : f32 to vector<320x1xf32>
    %86 = arith.select %83, %84, %85 : vector<320x1xi1>, vector<320x1xf32>
    %87 = vector.broadcast %86 : vector<320x1xf32> to vector<320x8xf32>
    %88 = arith.mulf %1, %87 : vector<320x8xf32>
    %cst_12 = arith.constant dense<0.000000e+00> : vector<8xf32>
    %89 = vector.multi_reduction <add>, %88, %cst_12 [0] : vector<320x8xf32> to vector<8xf32>
    %90 = vector.shape_cast %89 : vector<8xf32> to vector<1x8xf32>
    %91 = vector.extract_strided_slice %90 {offsets = [0, 0], sizes = [1, 1], strides = [1, 1]} : vector<1x8xf32> to vector<1x1xf32>
    %92 = vector.extract_strided_slice %90 {offsets = [0, 1], sizes = [1, 1], strides = [1, 1]} : vector<1x8xf32> to vector<1x1xf32>
    %93 = vector.extract_strided_slice %90 {offsets = [0, 4], sizes = [1, 1], strides = [1, 1]} : vector<1x8xf32> to vector<1x1xf32>
    %94 = vector.extract_strided_slice %90 {offsets = [0, 5], sizes = [1, 1], strides = [1, 1]} : vector<1x8xf32> to vector<1x1xf32>
    %95 = vector.broadcast %86 : vector<320x1xf32> to vector<320x128xf32>
    %96 = arith.mulf %34, %95 : vector<320x128xf32>
    %cst_13 = arith.constant dense<0.000000e+00> : vector<128xf32>
    %97 = vector.multi_reduction <add>, %96, %cst_13 [0] : vector<320x128xf32> to vector<128xf32>
    %98 = vector.shape_cast %97 : vector<128xf32> to vector<1x128xf32>
    %99 = tpu.iota {dimensions = array<i32: 0>} : vector<4x1xi32>
    %c1_i32 = arith.constant 1 : i32
    %100 = vector.broadcast %c1_i32 : i32 to vector<4x1xi32>
    %101 = arith.andi %99, %100 : vector<4x1xi32>
    %c0_i32 = arith.constant 0 : i32
    %102 = vector.broadcast %c0_i32 : i32 to vector<4x1xi32>
    %103 = arith.cmpi eq, %101, %102 : vector<4x1xi32>
    %104 = vector.shape_cast %91 : vector<1x1xf32> to vector<1x1xf32>
    %105 = vector.broadcast %104 : vector<1x1xf32> to vector<4x1xf32>
    %106 = vector.shape_cast %92 : vector<1x1xf32> to vector<1x1xf32>
    %107 = vector.broadcast %106 : vector<1x1xf32> to vector<4x1xf32>
    %108 = arith.select %103, %105, %107 : vector<4x1xi1>, vector<4x1xf32>
    %109 = vector.shape_cast %93 : vector<1x1xf32> to vector<1x1xf32>
    %110 = vector.broadcast %109 : vector<1x1xf32> to vector<4x1xf32>
    %111 = vector.shape_cast %94 : vector<1x1xf32> to vector<1x1xf32>
    %112 = vector.broadcast %111 : vector<1x1xf32> to vector<4x1xf32>
    %113 = arith.select %103, %110, %112 : vector<4x1xi1>, vector<4x1xf32>
    %114 = vector.extract_strided_slice %0 {offsets = [0, 0], sizes = [4, 128], strides = [1, 1]} : vector<8x128xf32> to vector<4x128xf32>
    %115 = vector.broadcast %108 : vector<4x1xf32> to vector<4x128xf32>
    %116 = arith.subf %114, %115 : vector<4x128xf32>
    %cst_14 = arith.constant 0.000000e+00 : f32
    %117 = vector.broadcast %cst_14 : f32 to vector<4x128xf32>
    %118 = arith.maximumf %117, %116 : vector<4x128xf32>
    %119 = vector.broadcast %113 : vector<4x1xf32> to vector<4x128xf32>
    %120 = arith.minimumf %119, %118 : vector<4x128xf32>
    %c0_15 = arith.constant 0 : index
    %c0_16 = arith.constant 0 : index
    %121 = vector.load %arg3[%c0_15, %c0_16] : memref<8x128xf32, #tpu.memory_space<vmem>>, vector<1x128xf32>
    tpu.vector_store %arg3[%c0_15, %c0_16], %98 {strides = array<i32>} : memref<8x128xf32, #tpu.memory_space<vmem>>, vector<1x128xf32>,
    %c1 = arith.constant 1 : index
    %c0_17 = arith.constant 0 : index
    %122 = vector.load %arg3[%c1, %c0_17] : memref<8x128xf32, #tpu.memory_space<vmem>>, vector<4x128xf32>
    tpu.vector_store %arg3[%c1, %c0_17], %120 {strides = array<i32>} : memref<8x128xf32, #tpu.memory_space<vmem>>, vector<4x128xf32>,
    %123 = vector.shape_cast %80 : vector<1x1xf32> to vector<1x1xf32>
    %124 = vector.broadcast %123 : vector<1x1xf32> to vector<1x128xf32>
    %c5 = arith.constant 5 : index
    %c0_18 = arith.constant 0 : index
    %125 = vector.load %arg3[%c5, %c0_18] : memref<8x128xf32, #tpu.memory_space<vmem>>, vector<1x128xf32>
    tpu.vector_store %arg3[%c5, %c0_18], %124 {strides = array<i32>} : memref<8x128xf32, #tpu.memory_space<vmem>>, vector<1x128xf32>,
    %cst_19 = arith.constant 0.000000e+00 : f32
    %126 = vector.broadcast %cst_19 : f32 to vector<2x128xf32>
    %c6 = arith.constant 6 : index
    %c0_20 = arith.constant 0 : index
    %127 = vector.load %arg3[%c6, %c0_20] : memref<8x128xf32, #tpu.memory_space<vmem>>, vector<2x128xf32>
    tpu.vector_store %arg3[%c6, %c0_20], %126 {strides = array<i32>} : memref<8x128xf32, #tpu.memory_space<vmem>>, vector<2x128xf32>,
    return
  }
  func.func @transform_0(%arg0: i32) -> (i32, i32) {
    %c0_i32 = arith.constant 0 : i32
    %c0_i32_0 = arith.constant 0 : i32
    %c0_i32_1 = arith.constant 0 : i32
    return %c0_i32, %c0_i32_0 : i32, i32
  }
  func.func @transform_1(%arg0: i32) -> (i32, i32) {
    %c0_i32 = arith.constant 0 : i32
    %c0_i32_0 = arith.constant 0 : i32
    %c0_i32_1 = arith.constant 0 : i32
    return %c0_i32, %c0_i32_0 : i32, i32
  }
  func.func @transform_2(%arg0: i32) -> (i32, i32) {
    %c0_i32 = arith.constant 0 : i32
    %c0_i32_0 = arith.constant 0 : i32
    %c0_i32_1 = arith.constant 0 : i32
    return %c0_i32, %c0_i32_0 : i32, i32
  }
}

</mosaic_0001>

<llo_original>
// kernel: _device_round.1
$region0: #{_device_round.1}
  #allocation0 [shape = 'u32[]', space=smem, size = 0x4, offset = 0x4, fixed_abs, tag = 'smem constant byte address 0x4 - core index']
  #allocation1 [shape = 'u32[144,128]{1,0:T(1,128)}', space=vmem, size = 0x12000, scoped, tag = 'internal scratch']
  %s0 = inlined_call_operand.vmem [shape: f32[8,128], index: 0, kind: input, shape index: {}]
  %s1 = inlined_call_operand.vmem [shape: f32[320,8], index: 1, kind: input, shape index: {}]
  %s2 = inlined_call_operand.vmem [shape: f32[8,128], index: 2, kind: output, shape index: {}]
  %s3 = sld [smem:[#allocation0]]
  $region18: #{_device_round.1} parent=0
    _
  %s5 = ssub.s32 1, %s3
  %s6 = scalar_select 0, %s5, %s3
  // Predicated region
  $region2: #{_device_round.1} parent=0 // pred_check
    _
  $region3: #{_device_round.1} parent=0 // pred_check_branch
    %8 = sbr.rel (0) target = $region5
  $region4: #{_device_round.1} parent=0 // pred_region
    _
  $region5: #{_device_round.1} parent=0 // pred_fallthru
    _
  // Predicated region
  $region6: #{_device_round.1} parent=0 // pred_check
    _
  $region7: #{_device_round.1} parent=0 // pred_check_branch
    %10 = sbr.rel (0) target = $region9
  $region8: #{_device_round.1} parent=0 // pred_region
    _
  $region9: #{_device_round.1} parent=0 // pred_fallthru
    _
  %v11 = vld [vmem:[%s0] sm:$0xff]
  %v12 = vld [vmem:[%s1] sm:$0xff]
  %v13 = vld [vmem:[%s1 + $0x8] sm:$0xff]
  %v14 = vld [vmem:[%s1 + $0x10] sm:$0xff]
  %v15 = vld [vmem:[%s1 + $0x18] sm:$0xff]
  %v16 = vld [vmem:[%s1 + $0x20] sm:$0xff]
  %v17 = vld [vmem:[%s1 + $0x28] sm:$0xff]
  %v18 = vld [vmem:[%s1 + $0x30] sm:$0xff]
  %v19 = vld [vmem:[%s1 + $0x38] sm:$0xff]
  %v20 = vld [vmem:[%s1 + $0x40] sm:$0xff]
  %v21 = vld [vmem:[%s1 + $0x48] sm:$0xff]
  %v22 = vld [vmem:[%s1 + $0x50] sm:$0xff]
  %v23 = vld [vmem:[%s1 + $0x58] sm:$0xff]
  %v24 = vld [vmem:[%s1 + $0x60] sm:$0xff]
  %v25 = vld [vmem:[%s1 + $0x68] sm:$0xff]
  %v26 = vld [vmem:[%s1 + $0x70] sm:$0xff]
  %v27 = vld [vmem:[%s1 + $0x78] sm:$0xff]
  %v28 = vld [vmem:[%s1 + $0x80] sm:$0xff]
  %v29 = vld [vmem:[%s1 + $0x88] sm:$0xff]
  %v30 = vld [vmem:[%s1 + $0x90] sm:$0xff]
  %v31 = vld [vmem:[%s1 + $0x98] sm:$0xff]
  %v32 = vld [vmem:[%s1 + $0xa0] sm:$0xff]
  %v33 = vld [vmem:[%s1 + $0xa8] sm:$0xff]
  %v34 = vld [vmem:[%s1 + $0xb0] sm:$0xff]
  %v35 = vld [vmem:[%s1 + $0xb8] sm:$0xff]
  %v36 = vld [vmem:[%s1 + $0xc0] sm:$0xff]
  %v37 = vld [vmem:[%s1 + $0xc8] sm:$0xff]
  %v38 = vld [vmem:[%s1 + $0xd0] sm:$0xff]
  %v39 = vld [vmem:[%s1 + $0xd8] sm:$0xff]
  %v40 = vld [vmem:[%s1 + $0xe0] sm:$0xff]
  %v41 = vld [vmem:[%s1 + $0xe8] sm:$0xff]
  %v42 = vld [vmem:[%s1 + $0xf0] sm:$0xff]
  %v43 = vld [vmem:[%s1 + $0xf8] sm:$0xff]
  %v44 = vld [vmem:[%s1 + $0x100] sm:$0xff]
  %v45 = vld [vmem:[%s1 + $0x108] sm:$0xff]
  %v46 = vld [vmem:[%s1 + $0x110] sm:$0xff]
  %v47 = vld [vmem:[%s1 + $0x118] sm:$0xff]
  %v48 = vld [vmem:[%s1 + $0x120] sm:$0xff]
  %v49 = vld [vmem:[%s1 + $0x128] sm:$0xff]
  %v50 = vld [vmem:[%s1 + $0x130] sm:$0xff]
  %v51 = vld [vmem:[%s1 + $0x138] sm:$0xff]
  %v53 = vrot.slane %v11, 2
  %v55 = vadd.f32 %v11, %v53
  %v56 = vmul.f32 %v55, 0.5
  %58 = vset.pattern.permute.xlu0 0
  %59 = vperm.xlu0 %58, %v12
  %v60 = vpop.permute.xlu0 %59
  %63 = vset.pattern.permute.xlu0 0
  %64 = vperm.xlu0 %63, %v13
  %v65 = vpop.permute.xlu0 %64
  %68 = vset.pattern.permute.xlu0 0
  %69 = vperm.xlu0 %68, %v14
  %v70 = vpop.permute.xlu0 %69
  %73 = vset.pattern.permute.xlu0 0
  %74 = vperm.xlu0 %73, %v15
  %v75 = vpop.permute.xlu0 %74
  %78 = vset.pattern.permute.xlu0 0
  %79 = vperm.xlu0 %78, %v16
  %v80 = vpop.permute.xlu0 %79
  %83 = vset.pattern.permute.xlu0 0
  %84 = vperm.xlu0 %83, %v17
  %v85 = vpop.permute.xlu0 %84
  %88 = vset.pattern.permute.xlu0 0
  %89 = vperm.xlu0 %88, %v18
  %v90 = vpop.permute.xlu0 %89
  %93 = vset.pattern.permute.xlu0 0
  %94 = vperm.xlu0 %93, %v19
  %v95 = vpop.permute.xlu0 %94
  %98 = vset.pattern.permute.xlu0 0
  %99 = vperm.xlu0 %98, %v20
  %v100 = vpop.permute.xlu0 %99
  %103 = vset.pattern.permute.xlu0 0
  %104 = vperm.xlu0 %103, %v21
  %v105 = vpop.permute.xlu0 %104
  %108 = vset.pattern.permute.xlu0 0
  %109 = vperm.xlu0 %108, %v22
  %v110 = vpop.permute.xlu0 %109
  %113 = vset.pattern.permute.xlu0 0
  %114 = vperm.xlu0 %113, %v23
  %v115 = vpop.permute.xlu0 %114
  %118 = vset.pattern.permute.xlu0 0
  %119 = vperm.xlu0 %118, %v24
  %v120 = vpop.permute.xlu0 %119
  %123 = vset.pattern.permute.xlu0 0
  %124 = vperm.xlu0 %123, %v25
  %v125 = vpop.permute.xlu0 %124
  %128 = vset.pattern.permute.xlu0 0
  %129 = vperm.xlu0 %128, %v26
  %v130 = vpop.permute.xlu0 %129
  %133 = vset.pattern.permute.xlu0 0
  %134 = vperm.xlu0 %133, %v27
  %v135 = vpop.permute.xlu0 %134
  %138 = vset.pattern.permute.xlu0 0
  %139 = vperm.xlu0 %138, %v28
  %v140 = vpop.permute.xlu0 %139
  %143 = vset.pattern.permute.xlu0 0
  %144 = vperm.xlu0 %143, %v29
  %v145 = vpop.permute.xlu0 %144
  %148 = vset.pattern.permute.xlu0 0
  %149 = vperm.xlu0 %148, %v30
  %v150 = vpop.permute.xlu0 %149
  %153 = vset.pattern.permute.xlu0 0
  %154 = vperm.xlu0 %153, %v31
  %v155 = vpop.permute.xlu0 %154
  %158 = vset.pattern.permute.xlu0 0
  %159 = vperm.xlu0 %158, %v32
  %v160 = vpop.permute.xlu0 %159
  %163 = vset.pattern.permute.xlu0 0
  %164 = vperm.xlu0 %163, %v33
  %v165 = vpop.permute.xlu0 %164
  %168 = vset.pattern.permute.xlu0 0
  %169 = vperm.xlu0 %168, %v34
  %v170 = vpop.permute.xlu0 %169
  %173 = vset.pattern.permute.xlu0 0
  %174 = vperm.xlu0 %173, %v35
  %v175 = vpop.permute.xlu0 %174
  %178 = vset.pattern.permute.xlu0 0
  %179 = vperm.xlu0 %178, %v36
  %v180 = vpop.permute.xlu0 %179
  %183 = vset.pattern.permute.xlu0 0
  %184 = vperm.xlu0 %183, %v37
  %v185 = vpop.permute.xlu0 %184
  %188 = vset.pattern.permute.xlu0 0
  %189 = vperm.xlu0 %188, %v38
  %v190 = vpop.permute.xlu0 %189
  %193 = vset.pattern.permute.xlu0 0
  %194 = vperm.xlu0 %193, %v39
  %v195 = vpop.permute.xlu0 %194
  %198 = vset.pattern.permute.xlu0 0
  %199 = vperm.xlu0 %198, %v40
  %v200 = vpop.permute.xlu0 %199
  %203 = vset.pattern.permute.xlu0 0
  %204 = vperm.xlu0 %203, %v41
  %v205 = vpop.permute.xlu0 %204
  %208 = vset.pattern.permute.xlu0 0
  %209 = vperm.xlu0 %208, %v42
  %v210 = vpop.permute.xlu0 %209
  %213 = vset.pattern.permute.xlu0 0
  %214 = vperm.xlu0 %213, %v43
  %v215 = vpop.permute.xlu0 %214
  %218 = vset.pattern.permute.xlu0 0
  %219 = vperm.xlu0 %218, %v44
  %v220 = vpop.permute.xlu0 %219
  %223 = vset.pattern.permute.xlu0 0
  %224 = vperm.xlu0 %223, %v45
  %v225 = vpop.permute.xlu0 %224
  %228 = vset.pattern.permute.xlu0 0
  %229 = vperm.xlu0 %228, %v46
  %v230 = vpop.permute.xlu0 %229
  %233 = vset.pattern.permute.xlu0 0
  %234 = vperm.xlu0 %233, %v47
  %v235 = vpop.permute.xlu0 %234
  %238 = vset.pattern.permute.xlu0 0
  %239 = vperm.xlu0 %238, %v48
  %v240 = vpop.permute.xlu0 %239
  %243 = vset.pattern.permute.xlu0 0
  %244 = vperm.xlu0 %243, %v49
  %v245 = vpop.permute.xlu0 %244
  %248 = vset.pattern.permute.xlu0 0
  %249 = vperm.xlu0 %248, %v50
  %v250 = vpop.permute.xlu0 %249
  %253 = vset.pattern.permute.xlu0 0
  %254 = vperm.xlu0 %253, %v51
  %v255 = vpop.permute.xlu0 %254
  %v257 = vlaneseq
  %v258 = vshrl.u32 %v257, 7
  %v259 = vsub.s32 0, %v258
  %v260 = vrot.slane %v56, %v259
  %vm261 = vcmp.lt.f32.partialorder %v60, %v260
  %vm262 = vcmp.lt.f32.partialorder %v65, %v260
  %vm263 = vcmp.lt.f32.partialorder %v70, %v260
  %vm264 = vcmp.lt.f32.partialorder %v75, %v260
  %vm265 = vcmp.lt.f32.partialorder %v80, %v260
  %vm266 = vcmp.lt.f32.partialorder %v85, %v260
  %vm267 = vcmp.lt.f32.partialorder %v90, %v260
  %vm268 = vcmp.lt.f32.partialorder %v95, %v260
  %vm269 = vcmp.lt.f32.partialorder %v100, %v260
  %vm270 = vcmp.lt.f32.partialorder %v105, %v260
  %vm271 = vcmp.lt.f32.partialorder %v110, %v260
  %vm272 = vcmp.lt.f32.partialorder %v115, %v260
  %vm273 = vcmp.lt.f32.partialorder %v120, %v260
  %vm274 = vcmp.lt.f32.partialorder %v125, %v260
  %vm275 = vcmp.lt.f32.partialorder %v130, %v260
  %vm276 = vcmp.lt.f32.partialorder %v135, %v260
  %vm277 = vcmp.lt.f32.partialorder %v140, %v260
  %vm278 = vcmp.lt.f32.partialorder %v145, %v260
  %vm279 = vcmp.lt.f32.partialorder %v150, %v260
  %vm280 = vcmp.lt.f32.partialorder %v155, %v260
  %vm281 = vcmp.lt.f32.partialorder %v160, %v260
  %vm282 = vcmp.lt.f32.partialorder %v165, %v260
  %vm283 = vcmp.lt.f32.partialorder %v170, %v260
  %vm284 = vcmp.lt.f32.partialorder %v175, %v260
  %vm285 = vcmp.lt.f32.partialorder %v180, %v260
  %vm286 = vcmp.lt.f32.partialorder %v185, %v260
  %vm287 = vcmp.lt.f32.partialorder %v190, %v260
  %vm288 = vcmp.lt.f32.partialorder %v195, %v260
  %vm289 = vcmp.lt.f32.partialorder %v200, %v260
  %vm290 = vcmp.lt.f32.partialorder %v205, %v260
  %vm291 = vcmp.lt.f32.partialorder %v210, %v260
  %vm292 = vcmp.lt.f32.partialorder %v215, %v260
  %vm293 = vcmp.lt.f32.partialorder %v220, %v260
  %vm294 = vcmp.lt.f32.partialorder %v225, %v260
  %vm295 = vcmp.lt.f32.partialorder %v230, %v260
  %vm296 = vcmp.lt.f32.partialorder %v235, %v260
  %vm297 = vcmp.lt.f32.partialorder %v240, %v260
  %vm298 = vcmp.lt.f32.partialorder %v245, %v260
  %vm299 = vcmp.lt.f32.partialorder %v250, %v260
  %vm300 = vcmp.lt.f32.partialorder %v255, %v260
  %301 = vset.pattern.permute.xlu0 2
  %302 = vperm.xlu0 %301, %v12
  %v303 = vpop.permute.xlu0 %302
  %305 = vset.pattern.permute.xlu0 2
  %306 = vperm.xlu0 %305, %v13
  %v307 = vpop.permute.xlu0 %306
  %309 = vset.pattern.permute.xlu0 2
  %310 = vperm.xlu0 %309, %v14
  %v311 = vpop.permute.xlu0 %310
  %313 = vset.pattern.permute.xlu0 2
  %314 = vperm.xlu0 %313, %v15
  %v315 = vpop.permute.xlu0 %314
  %317 = vset.pattern.permute.xlu0 2
  %318 = vperm.xlu0 %317, %v16
  %v319 = vpop.permute.xlu0 %318
  %321 = vset.pattern.permute.xlu0 2
  %322 = vperm.xlu0 %321, %v17
  %v323 = vpop.permute.xlu0 %322
  %325 = vset.pattern.permute.xlu0 2
  %326 = vperm.xlu0 %325, %v18
  %v327 = vpop.permute.xlu0 %326
  %329 = vset.pattern.permute.xlu0 2
  %330 = vperm.xlu0 %329, %v19
  %v331 = vpop.permute.xlu0 %330
  %333 = vset.pattern.permute.xlu0 2
  %334 = vperm.xlu0 %333, %v20
  %v335 = vpop.permute.xlu0 %334
  %337 = vset.pattern.permute.xlu0 2
  %338 = vperm.xlu0 %337, %v21
  %v339 = vpop.permute.xlu0 %338
  %341 = vset.pattern.permute.xlu0 2
  %342 = vperm.xlu0 %341, %v22
  %v343 = vpop.permute.xlu0 %342
  %345 = vset.pattern.permute.xlu0 2
  %346 = vperm.xlu0 %345, %v23
  %v347 = vpop.permute.xlu0 %346
  %349 = vset.pattern.permute.xlu0 2
  %350 = vperm.xlu0 %349, %v24
  %v351 = vpop.permute.xlu0 %350
  %353 = vset.pattern.permute.xlu0 2
  %354 = vperm.xlu0 %353, %v25
  %v355 = vpop.permute.xlu0 %354
  %357 = vset.pattern.permute.xlu0 2
  %358 = vperm.xlu0 %357, %v26
  %v359 = vpop.permute.xlu0 %358
  %361 = vset.pattern.permute.xlu0 2
  %362 = vperm.xlu0 %361, %v27
  %v363 = vpop.permute.xlu0 %362
  %365 = vset.pattern.permute.xlu0 2
  %366 = vperm.xlu0 %365, %v28
  %v367 = vpop.permute.xlu0 %366
  %369 = vset.pattern.permute.xlu0 2
  %370 = vperm.xlu0 %369, %v29
  %v371 = vpop.permute.xlu0 %370
  %373 = vset.pattern.permute.xlu0 2
  %374 = vperm.xlu0 %373, %v30
  %v375 = vpop.permute.xlu0 %374
  %377 = vset.pattern.permute.xlu0 2
  %378 = vperm.xlu0 %377, %v31
  %v379 = vpop.permute.xlu0 %378
  %381 = vset.pattern.permute.xlu0 2
  %382 = vperm.xlu0 %381, %v32
  %v383 = vpop.permute.xlu0 %382
  %385 = vset.pattern.permute.xlu0 2
  %386 = vperm.xlu0 %385, %v33
  %v387 = vpop.permute.xlu0 %386
  %389 = vset.pattern.permute.xlu0 2
  %390 = vperm.xlu0 %389, %v34
  %v391 = vpop.permute.xlu0 %390
  %393 = vset.pattern.permute.xlu0 2
  %394 = vperm.xlu0 %393, %v35
  %v395 = vpop.permute.xlu0 %394
  %397 = vset.pattern.permute.xlu0 2
  %398 = vperm.xlu0 %397, %v36
  %v399 = vpop.permute.xlu0 %398
  %401 = vset.pattern.permute.xlu0 2
  %402 = vperm.xlu0 %401, %v37
  %v403 = vpop.permute.xlu0 %402
  %405 = vset.pattern.permute.xlu0 2
  %406 = vperm.xlu0 %405, %v38
  %v407 = vpop.permute.xlu0 %406
  %409 = vset.pattern.permute.xlu0 2
  %410 = vperm.xlu0 %409, %v39
  %v411 = vpop.permute.xlu0 %410
  %413 = vset.pattern.permute.xlu0 2
  %414 = vperm.xlu0 %413, %v40
  %v415 = vpop.permute.xlu0 %414
  %417 = vset.pattern.permute.xlu0 2
  %418 = vperm.xlu0 %417, %v41
  %v419 = vpop.permute.xlu0 %418
  %421 = vset.pattern.permute.xlu0 2
  %422 = vperm.xlu0 %421, %v42
  %v423 = vpop.permute.xlu0 %422
  %425 = vset.pattern.permute.xlu0 2
  %426 = vperm.xlu0 %425, %v43
  %v427 = vpop.permute.xlu0 %426
  %429 = vset.pattern.permute.xlu0 2
  %430 = vperm.xlu0 %429, %v44
  %v431 = vpop.permute.xlu0 %430
  %433 = vset.pattern.permute.xlu0 2
  %434 = vperm.xlu0 %433, %v45
  %v435 = vpop.permute.xlu0 %434
  %437 = vset.pattern.permute.xlu0 2
  %438 = vperm.xlu0 %437, %v46
  %v439 = vpop.permute.xlu0 %438
  %441 = vset.pattern.permute.xlu0 2
  %442 = vperm.xlu0 %441, %v47
  %v443 = vpop.permute.xlu0 %442
  %445 = vset.pattern.permute.xlu0 2
  %446 = vperm.xlu0 %445, %v48
  %v447 = vpop.permute.xlu0 %446
  %449 = vset.pattern.permute.xlu0 2
  %450 = vperm.xlu0 %449, %v49
  %v451 = vpop.permute.xlu0 %450
  %453 = vset.pattern.permute.xlu0 2
  %454 = vperm.xlu0 %453, %v50
  %v455 = vpop.permute.xlu0 %454
  %457 = vset.pattern.permute.xlu0 2
  %458 = vperm.xlu0 %457, %v51
  %v459 = vpop.permute.xlu0 %458
  %vm461 = vcmp.lt.f32.partialorder %v260, %v303
  %vm462 = vcmp.lt.f32.partialorder %v260, %v307
  %vm463 = vcmp.lt.f32.partialorder %v260, %v311
  %vm464 = vcmp.lt.f32.partialorder %v260, %v315
  %vm465 = vcmp.lt.f32.partialorder %v260, %v319
  %vm466 = vcmp.lt.f32.partialorder %v260, %v323
  %vm467 = vcmp.lt.f32.partialorder %v260, %v327
  %vm468 = vcmp.lt.f32.partialorder %v260, %v331
  %vm469 = vcmp.lt.f32.partialorder %v260, %v335
  %vm470 = vcmp.lt.f32.partialorder %v260, %v339
  %vm471 = vcmp.lt.f32.partialorder %v260, %v343
  %vm472 = vcmp.lt.f32.partialorder %v260, %v347
  %vm473 = vcmp.lt.f32.partialorder %v260, %v351
  %vm474 = vcmp.lt.f32.partialorder %v260, %v355
  %vm475 = vcmp.lt.f32.partialorder %v260, %v359
  %vm476 = vcmp.lt.f32.partialorder %v260, %v363
  %vm477 = vcmp.lt.f32.partialorder %v260, %v367
  %vm478 = vcmp.lt.f32.partialorder %v260, %v371
  %vm479 = vcmp.lt.f32.partialorder %v260, %v375
  %vm480 = vcmp.lt.f32.partialorder %v260, %v379
  %vm481 = vcmp.lt.f32.partialorder %v260, %v383
  %vm482 = vcmp.lt.f32.partialorder %v260, %v387
  %vm483 = vcmp.lt.f32.partialorder %v260, %v391
  %vm484 = vcmp.lt.f32.partialorder %v260, %v395
  %vm485 = vcmp.lt.f32.partialorder %v260, %v399
  %vm486 = vcmp.lt.f32.partialorder %v260, %v403
  %vm487 = vcmp.lt.f32.partialorder %v260, %v407
  %vm488 = vcmp.lt.f32.partialorder %v260, %v411
  %vm489 = vcmp.lt.f32.partialorder %v260, %v415
  %vm490 = vcmp.lt.f32.partialorder %v260, %v419
  %vm491 = vcmp.lt.f32.partialorder %v260, %v423
  %vm492 = vcmp.lt.f32.partialorder %v260, %v427
  %vm493 = vcmp.lt.f32.partialorder %v260, %v431
  %vm494 = vcmp.lt.f32.partialorder %v260, %v435
  %vm495 = vcmp.lt.f32.partialorder %v260, %v439
  %vm496 = vcmp.lt.f32.partialorder %v260, %v443
  %vm497 = vcmp.lt.f32.partialorder %v260, %v447
  %vm498 = vcmp.lt.f32.partialorder %v260, %v451
  %vm499 = vcmp.lt.f32.partialorder %v260, %v455
  %vm500 = vcmp.lt.f32.partialorder %v260, %v459
  %vm501 = vmand %vm261, %vm461
  %vm502 = vmand %vm262, %vm462
  %vm503 = vmand %vm263, %vm463
  %vm504 = vmand %vm264, %vm464
  %vm505 = vmand %vm265, %vm465
  %vm506 = vmand %vm266, %vm466
  %vm507 = vmand %vm267, %vm467
  %vm508 = vmand %vm268, %vm468
  %vm509 = vmand %vm269, %vm469
  %vm510 = vmand %vm270, %vm470
  %vm511 = vmand %vm271, %vm471
  %vm512 = vmand %vm272, %vm472
  %vm513 = vmand %vm273, %vm473
  %vm514 = vmand %vm274, %vm474
  %vm515 = vmand %vm275, %vm475
  %vm516 = vmand %vm276, %vm476
  %vm517 = vmand %vm277, %vm477
  %vm518 = vmand %vm278, %vm478
  %vm519 = vmand %vm279, %vm479
  %vm520 = vmand %vm280, %vm480
  %vm521 = vmand %vm281, %vm481
  %vm522 = vmand %vm282, %vm482
  %vm523 = vmand %vm283, %vm483
  %vm524 = vmand %vm284, %vm484
  %vm525 = vmand %vm285, %vm485
  %vm526 = vmand %vm286, %vm486
  %vm527 = vmand %vm287, %vm487
  %vm528 = vmand %vm288, %vm488
  %vm529 = vmand %vm289, %vm489
  %vm530 = vmand %vm290, %vm490
  %vm531 = vmand %vm291, %vm491
  %vm532 = vmand %vm292, %vm492
  %vm533 = vmand %vm293, %vm493
  %vm534 = vmand %vm294, %vm494
  %vm535 = vmand %vm295, %vm495
  %vm536 = vmand %vm296, %vm496
  %vm537 = vmand %vm297, %vm497
  %vm538 = vmand %vm298, %vm498
  %vm539 = vmand %vm299, %vm499
  %vm540 = vmand %vm300, %vm500
  %541 = vset.pattern.permute.xlu0 1
  %542 = vperm.xlu0 %541, %v12
  %v543 = vpop.permute.xlu0 %542
  %545 = vset.pattern.permute.xlu0 1
  %546 = vperm.xlu0 %545, %v13
  %v547 = vpop.permute.xlu0 %546
  %549 = vset.pattern.permute.xlu0 1
  %550 = vperm.xlu0 %549, %v14
  %v551 = vpop.permute.xlu0 %550
  %553 = vset.pattern.permute.xlu0 1
  %554 = vperm.xlu0 %553, %v15
  %v555 = vpop.permute.xlu0 %554
  %557 = vset.pattern.permute.xlu0 1
  %558 = vperm.xlu0 %557, %v16
  %v559 = vpop.permute.xlu0 %558
  %561 = vset.pattern.permute.xlu0 1
  %562 = vperm.xlu0 %561, %v17
  %v563 = vpop.permute.xlu0 %562
  %565 = vset.pattern.permute.xlu0 1
  %566 = vperm.xlu0 %565, %v18
  %v567 = vpop.permute.xlu0 %566
  %569 = vset.pattern.permute.xlu0 1
  %570 = vperm.xlu0 %569, %v19
  %v571 = vpop.permute.xlu0 %570
  %573 = vset.pattern.permute.xlu0 1
  %574 = vperm.xlu0 %573, %v20
  %v575 = vpop.permute.xlu0 %574
  %577 = vset.pattern.permute.xlu0 1
  %578 = vperm.xlu0 %577, %v21
  %v579 = vpop.permute.xlu0 %578
  %581 = vset.pattern.permute.xlu0 1
  %582 = vperm.xlu0 %581, %v22
  %v583 = vpop.permute.xlu0 %582
  %585 = vset.pattern.permute.xlu0 1
  %586 = vperm.xlu0 %585, %v23
  %v587 = vpop.permute.xlu0 %586
  %589 = vset.pattern.permute.xlu0 1
  %590 = vperm.xlu0 %589, %v24
  %v591 = vpop.permute.xlu0 %590
  %593 = vset.pattern.permute.xlu0 1
  %594 = vperm.xlu0 %593, %v25
  %v595 = vpop.permute.xlu0 %594
  %597 = vset.pattern.permute.xlu0 1
  %598 = vperm.xlu0 %597, %v26
  %v599 = vpop.permute.xlu0 %598
  %601 = vset.pattern.permute.xlu0 1
  %602 = vperm.xlu0 %601, %v27
  %v603 = vpop.permute.xlu0 %602
  %605 = vset.pattern.permute.xlu0 1
  %606 = vperm.xlu0 %605, %v28
  %v607 = vpop.permute.xlu0 %606
  %609 = vset.pattern.permute.xlu0 1
  %610 = vperm.xlu0 %609, %v29
  %v611 = vpop.permute.xlu0 %610
  %613 = vset.pattern.permute.xlu0 1
  %614 = vperm.xlu0 %613, %v30
  %v615 = vpop.permute.xlu0 %614
  %617 = vset.pattern.permute.xlu0 1
  %618 = vperm.xlu0 %617, %v31
  %v619 = vpop.permute.xlu0 %618
  %621 = vset.pattern.permute.xlu0 1
  %622 = vperm.xlu0 %621, %v32
  %v623 = vpop.permute.xlu0 %622
  %625 = vset.pattern.permute.xlu0 1
  %626 = vperm.xlu0 %625, %v33
  %v627 = vpop.permute.xlu0 %626
  %629 = vset.pattern.permute.xlu0 1
  %630 = vperm.xlu0 %629, %v34
  %v631 = vpop.permute.xlu0 %630
  %633 = vset.pattern.permute.xlu0 1
  %634 = vperm.xlu0 %633, %v35
  %v635 = vpop.permute.xlu0 %634
  %637 = vset.pattern.permute.xlu0 1
  %638 = vperm.xlu0 %637, %v36
  %v639 = vpop.permute.xlu0 %638
  %641 = vset.pattern.permute.xlu0 1
  %642 = vperm.xlu0 %641, %v37
  %v643 = vpop.permute.xlu0 %642
  %645 = vset.pattern.permute.xlu0 1
  %646 = vperm.xlu0 %645, %v38
  %v647 = vpop.permute.xlu0 %646
  %649 = vset.pattern.permute.xlu0 1
  %650 = vperm.xlu0 %649, %v39
  %v651 = vpop.permute.xlu0 %650
  %653 = vset.pattern.permute.xlu0 1
  %654 = vperm.xlu0 %653, %v40
  %v655 = vpop.permute.xlu0 %654
  %657 = vset.pattern.permute.xlu0 1
  %658 = vperm.xlu0 %657, %v41
  %v659 = vpop.permute.xlu0 %658
  %661 = vset.pattern.permute.xlu0 1
  %662 = vperm.xlu0 %661, %v42
  %v663 = vpop.permute.xlu0 %662
  %665 = vset.pattern.permute.xlu0 1
  %666 = vperm.xlu0 %665, %v43
  %v667 = vpop.permute.xlu0 %666
  %669 = vset.pattern.permute.xlu0 1
  %670 = vperm.xlu0 %669, %v44
  %v671 = vpop.permute.xlu0 %670
  %673 = vset.pattern.permute.xlu0 1
  %674 = vperm.xlu0 %673, %v45
  %v675 = vpop.permute.xlu0 %674
  %677 = vset.pattern.permute.xlu0 1
  %678 = vperm.xlu0 %677, %v46
  %v679 = vpop.permute.xlu0 %678
  %681 = vset.pattern.permute.xlu0 1
  %682 = vperm.xlu0 %681, %v47
  %v683 = vpop.permute.xlu0 %682
  %685 = vset.pattern.permute.xlu0 1
  %686 = vperm.xlu0 %685, %v48
  %v687 = vpop.permute.xlu0 %686
  %689 = vset.pattern.permute.xlu0 1
  %690 = vperm.xlu0 %689, %v49
  %v691 = vpop.permute.xlu0 %690
  %693 = vset.pattern.permute.xlu0 1
  %694 = vperm.xlu0 %693, %v50
  %v695 = vpop.permute.xlu0 %694
  %697 = vset.pattern.permute.xlu0 1
  %698 = vperm.xlu0 %697, %v51
  %v699 = vpop.permute.xlu0 %698
  %v701 = vlaneseq
  %v702 = vshrl.u32 %v701, 7
  %v703 = vsub.s32 1, %v702
  %v704 = vrot.slane %v56, %v703
  %vm705 = vcmp.lt.f32.partialorder %v543, %v704
  %vm706 = vcmp.lt.f32.partialorder %v547, %v704
  %vm707 = vcmp.lt.f32.partialorder %v551, %v704
  %vm708 = vcmp.lt.f32.partialorder %v555, %v704
  %vm709 = vcmp.lt.f32.partialorder %v559, %v704
  %vm710 = vcmp.lt.f32.partialorder %v563, %v704
  %vm711 = vcmp.lt.f32.partialorder %v567, %v704
  %vm712 = vcmp.lt.f32.partialorder %v571, %v704
  %vm713 = vcmp.lt.f32.partialorder %v575, %v704
  %vm714 = vcmp.lt.f32.partialorder %v579, %v704
  %vm715 = vcmp.lt.f32.partialorder %v583, %v704
  %vm716 = vcmp.lt.f32.partialorder %v587, %v704
  %vm717 = vcmp.lt.f32.partialorder %v591, %v704
  %vm718 = vcmp.lt.f32.partialorder %v595, %v704
  %vm719 = vcmp.lt.f32.partialorder %v599, %v704
  %vm720 = vcmp.lt.f32.partialorder %v603, %v704
  %vm721 = vcmp.lt.f32.partialorder %v607, %v704
  %vm722 = vcmp.lt.f32.partialorder %v611, %v704
  %vm723 = vcmp.lt.f32.partialorder %v615, %v704
  %vm724 = vcmp.lt.f32.partialorder %v619, %v704
  %vm725 = vcmp.lt.f32.partialorder %v623, %v704
  %vm726 = vcmp.lt.f32.partialorder %v627, %v704
  %vm727 = vcmp.lt.f32.partialorder %v631, %v704
  %vm728 = vcmp.lt.f32.partialorder %v635, %v704
  %vm729 = vcmp.lt.f32.partialorder %v639, %v704
  %vm730 = vcmp.lt.f32.partialorder %v643, %v704
  %vm731 = vcmp.lt.f32.partialorder %v647, %v704
  %vm732 = vcmp.lt.f32.partialorder %v651, %v704
  %vm733 = vcmp.lt.f32.partialorder %v655, %v704
  %vm734 = vcmp.lt.f32.partialorder %v659, %v704
  %vm735 = vcmp.lt.f32.partialorder %v663, %v704
  %vm736 = vcmp.lt.f32.partialorder %v667, %v704
  %vm737 = vcmp.lt.f32.partialorder %v671, %v704
  %vm738 = vcmp.lt.f32.partialorder %v675, %v704
  %vm739 = vcmp.lt.f32.partialorder %v679, %v704
  %vm740 = vcmp.lt.f32.partialorder %v683, %v704
  %vm741 = vcmp.lt.f32.partialorder %v687, %v704
  %vm742 = vcmp.lt.f32.partialorder %v691, %v704
  %vm743 = vcmp.lt.f32.partialorder %v695, %v704
  %vm744 = vcmp.lt.f32.partialorder %v699, %v704
  %vm745 = vmand %vm501, %vm705
  %vm746 = vmand %vm502, %vm706
  %vm747 = vmand %vm503, %vm707
  %vm748 = vmand %vm504, %vm708
  %vm749 = vmand %vm505, %vm709
  %vm750 = vmand %vm506, %vm710
  %vm751 = vmand %vm507, %vm711
  %vm752 = vmand %vm508, %vm712
  %vm753 = vmand %vm509, %vm713
  %vm754 = vmand %vm510, %vm714
  %vm755 = vmand %vm511, %vm715
  %vm756 = vmand %vm512, %vm716
  %vm757 = vmand %vm513, %vm717
  %vm758 = vmand %vm514, %vm718
  %vm759 = vmand %vm515, %vm719
  %vm760 = vmand %vm516, %vm720
  %vm761 = vmand %vm517, %vm721
  %vm762 = vmand %vm518, %vm722
  %vm763 = vmand %vm519, %vm723
  %vm764 = vmand %vm520, %vm724
  %vm765 = vmand %vm521, %vm725
  %vm766 = vmand %vm522, %vm726
  %vm767 = vmand %vm523, %vm727
  %vm768 = vmand %vm524, %vm728
  %vm769 = vmand %vm525, %vm729
  %vm770 = vmand %vm526, %vm730
  %vm771 = vmand %vm527, %vm731
  %vm772 = vmand %vm528, %vm732
  %vm773 = vmand %vm529, %vm733
  %vm774 = vmand %vm530, %vm734
  %vm775 = vmand %vm531, %vm735
  %vm776 = vmand %vm532, %vm736
  %vm777 = vmand %vm533, %vm737
  %vm778 = vmand %vm534, %vm738
  %vm779 = vmand %vm535, %vm739
  %vm780 = vmand %vm536, %vm740
  %vm781 = vmand %vm537, %vm741
  %vm782 = vmand %vm538, %vm742
  %vm783 = vmand %vm539, %vm743
  %vm784 = vmand %vm540, %vm744
  %785 = vset.pattern.permute.xlu0 3
  %786 = vperm.xlu0 %785, %v12
  %v787 = vpop.permute.xlu0 %786
  %789 = vset.pattern.permute.xlu0 3
  %790 = vperm.xlu0 %789, %v13
  %v791 = vpop.permute.xlu0 %790
  %793 = vset.pattern.permute.xlu0 3
  %794 = vperm.xlu0 %793, %v14
  %v795 = vpop.permute.xlu0 %794
  %797 = vset.pattern.permute.xlu0 3
  %798 = vperm.xlu0 %797, %v15
  %v799 = vpop.permute.xlu0 %798
  %801 = vset.pattern.permute.xlu0 3
  %802 = vperm.xlu0 %801, %v16
  %v803 = vpop.permute.xlu0 %802
  %805 = vset.pattern.permute.xlu0 3
  %806 = vperm.xlu0 %805, %v17
  %v807 = vpop.permute.xlu0 %806
  %809 = vset.pattern.permute.xlu0 3
  %810 = vperm.xlu0 %809, %v18
  %v811 = vpop.permute.xlu0 %810
  %813 = vset.pattern.permute.xlu0 3
  %814 = vperm.xlu0 %813, %v19
  %v815 = vpop.permute.xlu0 %814
  %817 = vset.pattern.permute.xlu0 3
  %818 = vperm.xlu0 %817, %v20
  %v819 = vpop.permute.xlu0 %818
  %821 = vset.pattern.permute.xlu0 3
  %822 = vperm.xlu0 %821, %v21
  %v823 = vpop.permute.xlu0 %822
  %825 = vset.pattern.permute.xlu0 3
  %826 = vperm.xlu0 %825, %v22
  %v827 = vpop.permute.xlu0 %826
  %829 = vset.pattern.permute.xlu0 3
  %830 = vperm.xlu0 %829, %v23
  %v831 = vpop.permute.xlu0 %830
  %833 = vset.pattern.permute.xlu0 3
  %834 = vperm.xlu0 %833, %v24
  %v835 = vpop.permute.xlu0 %834
  %837 = vset.pattern.permute.xlu0 3
  %838 = vperm.xlu0 %837, %v25
  %v839 = vpop.permute.xlu0 %838
  %841 = vset.pattern.permute.xlu0 3
  %842 = vperm.xlu0 %841, %v26
  %v843 = vpop.permute.xlu0 %842
  %845 = vset.pattern.permute.xlu0 3
  %846 = vperm.xlu0 %845, %v27
  %v847 = vpop.permute.xlu0 %846
  %849 = vset.pattern.permute.xlu0 3
  %850 = vperm.xlu0 %849, %v28
  %v851 = vpop.permute.xlu0 %850
  %853 = vset.pattern.permute.xlu0 3
  %854 = vperm.xlu0 %853, %v29
  %v855 = vpop.permute.xlu0 %854
  %857 = vset.pattern.permute.xlu0 3
  %858 = vperm.xlu0 %857, %v30
  %v859 = vpop.permute.xlu0 %858
  %861 = vset.pattern.permute.xlu0 3
  %862 = vperm.xlu0 %861, %v31
  %v863 = vpop.permute.xlu0 %862
  %865 = vset.pattern.permute.xlu0 3
  %866 = vperm.xlu0 %865, %v32
  %v867 = vpop.permute.xlu0 %866
  %869 = vset.pattern.permute.xlu0 3
  %870 = vperm.xlu0 %869, %v33
  %v871 = vpop.permute.xlu0 %870
  %873 = vset.pattern.permute.xlu0 3
  %874 = vperm.xlu0 %873, %v34
  %v875 = vpop.permute.xlu0 %874
  %877 = vset.pattern.permute.xlu0 3
  %878 = vperm.xlu0 %877, %v35
  %v879 = vpop.permute.xlu0 %878
  %881 = vset.pattern.permute.xlu0 3
  %882 = vperm.xlu0 %881, %v36
  %v883 = vpop.permute.xlu0 %882
  %885 = vset.pattern.permute.xlu0 3
  %886 = vperm.xlu0 %885, %v37
  %v887 = vpop.permute.xlu0 %886
  %889 = vset.pattern.permute.xlu0 3
  %890 = vperm.xlu0 %889, %v38
  %v891 = vpop.permute.xlu0 %890
  %893 = vset.pattern.permute.xlu0 3
  %894 = vperm.xlu0 %893, %v39
  %v895 = vpop.permute.xlu0 %894
  %897 = vset.pattern.permute.xlu0 3
  %898 = vperm.xlu0 %897, %v40
  %v899 = vpop.permute.xlu0 %898
  %901 = vset.pattern.permute.xlu0 3
  %902 = vperm.xlu0 %901, %v41
  %v903 = vpop.permute.xlu0 %902
  %905 = vset.pattern.permute.xlu0 3
  %906 = vperm.xlu0 %905, %v42
  %v907 = vpop.permute.xlu0 %906
  %909 = vset.pattern.permute.xlu0 3
  %910 = vperm.xlu0 %909, %v43
  %v911 = vpop.permute.xlu0 %910
  %913 = vset.pattern.permute.xlu0 3
  %914 = vperm.xlu0 %913, %v44
  %v915 = vpop.permute.xlu0 %914
  %917 = vset.pattern.permute.xlu0 3
  %918 = vperm.xlu0 %917, %v45
  %v919 = vpop.permute.xlu0 %918
  %921 = vset.pattern.permute.xlu0 3
  %922 = vperm.xlu0 %921, %v46
  %v923 = vpop.permute.xlu0 %922
  %925 = vset.pattern.permute.xlu0 3
  %926 = vperm.xlu0 %925, %v47
  %v927 = vpop.permute.xlu0 %926
  %929 = vset.pattern.permute.xlu0 3
  %930 = vperm.xlu0 %929, %v48
  %v931 = vpop.permute.xlu0 %930
  %933 = vset.pattern.permute.xlu0 3
  %934 = vperm.xlu0 %933, %v49
  %v935 = vpop.permute.xlu0 %934
  %937 = vset.pattern.permute.xlu0 3
  %938 = vperm.xlu0 %937, %v50
  %v939 = vpop.permute.xlu0 %938
  %941 = vset.pattern.permute.xlu0 3
  %942 = vperm.xlu0 %941, %v51
  %v943 = vpop.permute.xlu0 %942
  %vm945 = vcmp.lt.f32.partialorder %v704, %v787
  %vm946 = vcmp.lt.f32.partialorder %v704, %v791
  %vm947 = vcmp.lt.f32.partialorder %v704, %v795
  %vm948 = vcmp.lt.f32.partialorder %v704, %v799
  %vm949 = vcmp.lt.f32.partialorder %v704, %v803
  %vm950 = vcmp.lt.f32.partialorder %v704, %v807
  %vm951 = vcmp.lt.f32.partialorder %v704, %v811
  %vm952 = vcmp.lt.f32.partialorder %v704, %v815
  %vm953 = vcmp.lt.f32.partialorder %v704, %v819
  %vm954 = vcmp.lt.f32.partialorder %v704, %v823
  %vm955 = vcmp.lt.f32.partialorder %v704, %v827
  %vm956 = vcmp.lt.f32.partialorder %v704, %v831
  %vm957 = vcmp.lt.f32.partialorder %v704, %v835
  %vm958 = vcmp.lt.f32.partialorder %v704, %v839
  %vm959 = vcmp.lt.f32.partialorder %v704, %v843
  %vm960 = vcmp.lt.f32.partialorder %v704, %v847
  %vm961 = vcmp.lt.f32.partialorder %v704, %v851
  %vm962 = vcmp.lt.f32.partialorder %v704, %v855
  %vm963 = vcmp.lt.f32.partialorder %v704, %v859
  %vm964 = vcmp.lt.f32.partialorder %v704, %v863
  %vm965 = vcmp.lt.f32.partialorder %v704, %v867
  %vm966 = vcmp.lt.f32.partialorder %v704, %v871
  %vm967 = vcmp.lt.f32.partialorder %v704, %v875
  %vm968 = vcmp.lt.f32.partialorder %v704, %v879
  %vm969 = vcmp.lt.f32.partialorder %v704, %v883
  %vm970 = vcmp.lt.f32.partialorder %v704, %v887
  %vm971 = vcmp.lt.f32.partialorder %v704, %v891
  %vm972 = vcmp.lt.f32.partialorder %v704, %v895
  %vm973 = vcmp.lt.f32.partialorder %v704, %v899
  %vm974 = vcmp.lt.f32.partialorder %v704, %v903
  %vm975 = vcmp.lt.f32.partialorder %v704, %v907
  %vm976 = vcmp.lt.f32.partialorder %v704, %v911
  %vm977 = vcmp.lt.f32.partialorder %v704, %v915
  %vm978 = vcmp.lt.f32.partialorder %v704, %v919
  %vm979 = vcmp.lt.f32.partialorder %v704, %v923
  %vm980 = vcmp.lt.f32.partialorder %v704, %v927
  %vm981 = vcmp.lt.f32.partialorder %v704, %v931
  %vm982 = vcmp.lt.f32.partialorder %v704, %v935
  %vm983 = vcmp.lt.f32.partialorder %v704, %v939
  %vm984 = vcmp.lt.f32.partialorder %v704, %v943
  %vm985 = vmand %vm745, %vm945
  %vm986 = vmand %vm746, %vm946
  %vm987 = vmand %vm747, %vm947
  %vm988 = vmand %vm748, %vm948
  %vm989 = vmand %vm749, %vm949
  %vm990 = vmand %vm750, %vm950
  %vm991 = vmand %vm751, %vm951
  %vm992 = vmand %vm752, %vm952
  %vm993 = vmand %vm753, %vm953
  %vm994 = vmand %vm754, %vm954
  %vm995 = vmand %vm755, %vm955
  %vm996 = vmand %vm756, %vm956
  %vm997 = vmand %vm757, %vm957
  %vm998 = vmand %vm758, %vm958
  %vm999 = vmand %vm759, %vm959
  %vm1000 = vmand %vm760, %vm960
  %vm1001 = vmand %vm761, %vm961
  %vm1002 = vmand %vm762, %vm962
  %vm1003 = vmand %vm763, %vm963
  %vm1004 = vmand %vm764, %vm964
  %vm1005 = vmand %vm765, %vm965
  %vm1006 = vmand %vm766, %vm966
  %vm1007 = vmand %vm767, %vm967
  %vm1008 = vmand %vm768, %vm968
  %vm1009 = vmand %vm769, %vm969
  %vm1010 = vmand %vm770, %vm970
  %vm1011 = vmand %vm771, %vm971
  %vm1012 = vmand %vm772, %vm972
  %vm1013 = vmand %vm773, %vm973
  %vm1014 = vmand %vm774, %vm974
  %vm1015 = vmand %vm775, %vm975
  %vm1016 = vmand %vm776, %vm976
  %vm1017 = vmand %vm777, %vm977
  %vm1018 = vmand %vm778, %vm978
  %vm1019 = vmand %vm779, %vm979
  %vm1020 = vmand %vm780, %vm980
  %vm1021 = vmand %vm781, %vm981
  %vm1022 = vmand %vm782, %vm982
  %vm1023 = vmand %vm783, %vm983
  %vm1024 = vmand %vm784, %vm984
  %v1025 = vsel %vm985, 1, 0
  %v1026 = vsel %vm986, 1, 0
  %v1027 = vsel %vm987, 1, 0
  %v1028 = vsel %vm988, 1, 0
  %v1029 = vsel %vm989, 1, 0
  %v1030 = vsel %vm990, 1, 0
  %v1031 = vsel %vm991, 1, 0
  %v1032 = vsel %vm992, 1, 0
  %v1033 = vsel %vm993, 1, 0
  %v1034 = vsel %vm994, 1, 0
  %v1035 = vsel %vm995, 1, 0
  %v1036 = vsel %vm996, 1, 0
  %v1037 = vsel %vm997, 1, 0
  %v1038 = vsel %vm998, 1, 0
  %v1039 = vsel %vm999, 1, 0
  %v1040 = vsel %vm1000, 1, 0
  %v1041 = vsel %vm1001, 1, 0
  %v1042 = vsel %vm1002, 1, 0
  %v1043 = vsel %vm1003, 1, 0
  %v1044 = vsel %vm1004, 1, 0
  %v1045 = vsel %vm1005, 1, 0
  %v1046 = vsel %vm1006, 1, 0
  %v1047 = vsel %vm1007, 1, 0
  %v1048 = vsel %vm1008, 1, 0
  %v1049 = vsel %vm1009, 1, 0
  %v1050 = vsel %vm1010, 1, 0
  %v1051 = vsel %vm1011, 1, 0
  %v1052 = vsel %vm1012, 1, 0
  %v1053 = vsel %vm1013, 1, 0
  %v1054 = vsel %vm1014, 1, 0
  %v1055 = vsel %vm1015, 1, 0
  %v1056 = vsel %vm1016, 1, 0
  %v1057 = vsel %vm1017, 1, 0
  %v1058 = vsel %vm1018, 1, 0
  %v1059 = vsel %vm1019, 1, 0
  %v1060 = vsel %vm1020, 1, 0
  %v1061 = vsel %vm1021, 1, 0
  %v1062 = vsel %vm1022, 1, 0
  %v1063 = vsel %vm1023, 1, 0
  %v1064 = vsel %vm1024, 1, 0
  %v1065 = vcvt.s32.f32 %v1025
  %v1066 = vcvt.s32.f32 %v1026
  %v1067 = vcvt.s32.f32 %v1027
  %v1068 = vcvt.s32.f32 %v1028
  %v1069 = vcvt.s32.f32 %v1029
  %v1070 = vcvt.s32.f32 %v1030
  %v1071 = vcvt.s32.f32 %v1031
  %v1072 = vcvt.s32.f32 %v1032
  %v1073 = vcvt.s32.f32 %v1033
  %v1074 = vcvt.s32.f32 %v1034
  %v1075 = vcvt.s32.f32 %v1035
  %v1076 = vcvt.s32.f32 %v1036
  %v1077 = vcvt.s32.f32 %v1037
  %v1078 = vcvt.s32.f32 %v1038
  %v1079 = vcvt.s32.f32 %v1039
  %v1080 = vcvt.s32.f32 %v1040
  %v1081 = vcvt.s32.f32 %v1041
  %v1082 = vcvt.s32.f32 %v1042
  %v1083 = vcvt.s32.f32 %v1043
  %v1084 = vcvt.s32.f32 %v1044
  %v1085 = vcvt.s32.f32 %v1045
  %v1086 = vcvt.s32.f32 %v1046
  %v1087 = vcvt.s32.f32 %v1047
  %v1088 = vcvt.s32.f32 %v1048
  %v1089 = vcvt.s32.f32 %v1049
  %v1090 = vcvt.s32.f32 %v1050
  %v1091 = vcvt.s32.f32 %v1051
  %v1092 = vcvt.s32.f32 %v1052
  %v1093 = vcvt.s32.f32 %v1053
  %v1094 = vcvt.s32.f32 %v1054
  %v1095 = vcvt.s32.f32 %v1055
  %v1096 = vcvt.s32.f32 %v1056
  %v1097 = vcvt.s32.f32 %v1057
  %v1098 = vcvt.s32.f32 %v1058
  %v1099 = vcvt.s32.f32 %v1059
  %v1100 = vcvt.s32.f32 %v1060
  %v1101 = vcvt.s32.f32 %v1061
  %v1102 = vcvt.s32.f32 %v1062
  %v1103 = vcvt.s32.f32 %v1063
  %v1104 = vcvt.s32.f32 %v1064
  %v1105 = vrot.slane %v11, 6
  %v1107 = vsub.f32 %v11, %v1105
  %v1109 = vrot.slane %v1107, 1
  %v1111 = vmul.f32 %v1107, %v1109
  %1112 = vrot.lane.b32.xlu0 %v12, 2
  %v1113 = vpop.permute.xlu0 %1112
  %1114 = vrot.lane.b32.xlu0 %v13, 2
  %v1115 = vpop.permute.xlu0 %1114
  %1116 = vrot.lane.b32.xlu0 %v14, 2
  %v1117 = vpop.permute.xlu0 %1116
  %1118 = vrot.lane.b32.xlu0 %v15, 2
  %v1119 = vpop.permute.xlu0 %1118
  %1120 = vrot.lane.b32.xlu0 %v16, 2
  %v1121 = vpop.permute.xlu0 %1120
  %1122 = vrot.lane.b32.xlu0 %v17, 2
  %v1123 = vpop.permute.xlu0 %1122
  %1124 = vrot.lane.b32.xlu0 %v18, 2
  %v1125 = vpop.permute.xlu0 %1124
  %1126 = vrot.lane.b32.xlu0 %v19, 2
  %v1127 = vpop.permute.xlu0 %1126
  %1128 = vrot.lane.b32.xlu0 %v20, 2
  %v1129 = vpop.permute.xlu0 %1128
  %1130 = vrot.lane.b32.xlu0 %v21, 2
  %v1131 = vpop.permute.xlu0 %1130
  %1132 = vrot.lane.b32.xlu0 %v22, 2
  %v1133 = vpop.permute.xlu0 %1132
  %1134 = vrot.lane.b32.xlu0 %v23, 2
  %v1135 = vpop.permute.xlu0 %1134
  %1136 = vrot.lane.b32.xlu0 %v24, 2
  %v1137 = vpop.permute.xlu0 %1136
  %1138 = vrot.lane.b32.xlu0 %v25, 2
  %v1139 = vpop.permute.xlu0 %1138
  %1140 = vrot.lane.b32.xlu0 %v26, 2
  %v1141 = vpop.permute.xlu0 %1140
  %1142 = vrot.lane.b32.xlu0 %v27, 2
  %v1143 = vpop.permute.xlu0 %1142
  %1144 = vrot.lane.b32.xlu0 %v28, 2
  %v1145 = vpop.permute.xlu0 %1144
  %1146 = vrot.lane.b32.xlu0 %v29, 2
  %v1147 = vpop.permute.xlu0 %1146
  %1148 = vrot.lane.b32.xlu0 %v30, 2
  %v1149 = vpop.permute.xlu0 %1148
  %1150 = vrot.lane.b32.xlu0 %v31, 2
  %v1151 = vpop.permute.xlu0 %1150
  %1152 = vrot.lane.b32.xlu0 %v32, 2
  %v1153 = vpop.permute.xlu0 %1152
  %1154 = vrot.lane.b32.xlu0 %v33, 2
  %v1155 = vpop.permute.xlu0 %1154
  %1156 = vrot.lane.b32.xlu0 %v34, 2
  %v1157 = vpop.permute.xlu0 %1156
  %1158 = vrot.lane.b32.xlu0 %v35, 2
  %v1159 = vpop.permute.xlu0 %1158
  %1160 = vrot.lane.b32.xlu0 %v36, 2
  %v1161 = vpop.permute.xlu0 %1160
  %1162 = vrot.lane.b32.xlu0 %v37, 2
  %v1163 = vpop.permute.xlu0 %1162
  %1164 = vrot.lane.b32.xlu0 %v38, 2
  %v1165 = vpop.permute.xlu0 %1164
  %1166 = vrot.lane.b32.xlu0 %v39, 2
  %v1167 = vpop.permute.xlu0 %1166
  %1168 = vrot.lane.b32.xlu0 %v40, 2
  %v1169 = vpop.permute.xlu0 %1168
  %1170 = vrot.lane.b32.xlu0 %v41, 2
  %v1171 = vpop.permute.xlu0 %1170
  %1172 = vrot.lane.b32.xlu0 %v42, 2
  %v1173 = vpop.permute.xlu0 %1172
  %1174 = vrot.lane.b32.xlu0 %v43, 2
  %v1175 = vpop.permute.xlu0 %1174
  %1176 = vrot.lane.b32.xlu0 %v44, 2
  %v1177 = vpop.permute.xlu0 %1176
  %1178 = vrot.lane.b32.xlu0 %v45, 2
  %v1179 = vpop.permute.xlu0 %1178
  %1180 = vrot.lane.b32.xlu0 %v46, 2
  %v1181 = vpop.permute.xlu0 %1180
  %1182 = vrot.lane.b32.xlu0 %v47, 2
  %v1183 = vpop.permute.xlu0 %1182
  %1184 = vrot.lane.b32.xlu0 %v48, 2
  %v1185 = vpop.permute.xlu0 %1184
  %1186 = vrot.lane.b32.xlu0 %v49, 2
  %v1187 = vpop.permute.xlu0 %1186
  %1188 = vrot.lane.b32.xlu0 %v50, 2
  %v1189 = vpop.permute.xlu0 %1188
  %1190 = vrot.lane.b32.xlu0 %v51, 2
  %v1191 = vpop.permute.xlu0 %1190
  %v1232 = vsub.f32 %v12, %v1113
  %v1233 = vsub.f32 %v13, %v1115
  %v1234 = vsub.f32 %v14, %v1117
  %v1235 = vsub.f32 %v15, %v1119
  %v1236 = vsub.f32 %v16, %v1121
  %v1237 = vsub.f32 %v17, %v1123
  %v1238 = vsub.f32 %v18, %v1125
  %v1239 = vsub.f32 %v19, %v1127
  %v1240 = vsub.f32 %v20, %v1129
  %v1241 = vsub.f32 %v21, %v1131
  %v1242 = vsub.f32 %v22, %v1133
  %v1243 = vsub.f32 %v23, %v1135
  %v1244 = vsub.f32 %v24, %v1137
  %v1245 = vsub.f32 %v25, %v1139
  %v1246 = vsub.f32 %v26, %v1141
  %v1247 = vsub.f32 %v27, %v1143
  %v1248 = vsub.f32 %v28, %v1145
  %v1249 = vsub.f32 %v29, %v1147
  %v1250 = vsub.f32 %v30, %v1149
  %v1251 = vsub.f32 %v31, %v1151
  %v1252 = vsub.f32 %v32, %v1153
  %v1253 = vsub.f32 %v33, %v1155
  %v1254 = vsub.f32 %v34, %v1157
  %v1255 = vsub.f32 %v35, %v1159
  %v1256 = vsub.f32 %v36, %v1161
  %v1257 = vsub.f32 %v37, %v1163
  %v1258 = vsub.f32 %v38, %v1165
  %v1259 = vsub.f32 %v39, %v1167
  %v1260 = vsub.f32 %v40, %v1169
  %v1261 = vsub.f32 %v41, %v1171
  %v1262 = vsub.f32 %v42, %v1173
  %v1263 = vsub.f32 %v43, %v1175
  %v1264 = vsub.f32 %v44, %v1177
  %v1265 = vsub.f32 %v45, %v1179
  %v1266 = vsub.f32 %v46, %v1181
  %v1267 = vsub.f32 %v47, %v1183
  %v1268 = vsub.f32 %v48, %v1185
  %v1269 = vsub.f32 %v49, %v1187
  %v1270 = vsub.f32 %v50, %v1189
  %v1271 = vsub.f32 %v51, %v1191
  %1312 = vrot.lane.b32.xlu0 %v1232, 127
  %v1313 = vpop.permute.xlu0 %1312
  %1314 = vrot.lane.b32.xlu0 %v1233, 127
  %v1315 = vpop.permute.xlu0 %1314
  %1316 = vrot.lane.b32.xlu0 %v1234, 127
  %v1317 = vpop.permute.xlu0 %1316
  %1318 = vrot.lane.b32.xlu0 %v1235, 127
  %v1319 = vpop.permute.xlu0 %1318
  %1320 = vrot.lane.b32.xlu0 %v1236, 127
  %v1321 = vpop.permute.xlu0 %1320
  %1322 = vrot.lane.b32.xlu0 %v1237, 127
  %v1323 = vpop.permute.xlu0 %1322
  %1324 = vrot.lane.b32.xlu0 %v1238, 127
  %v1325 = vpop.permute.xlu0 %1324
  %1326 = vrot.lane.b32.xlu0 %v1239, 127
  %v1327 = vpop.permute.xlu0 %1326
  %1328 = vrot.lane.b32.xlu0 %v1240, 127
  %v1329 = vpop.permute.xlu0 %1328
  %1330 = vrot.lane.b32.xlu0 %v1241, 127
  %v1331 = vpop.permute.xlu0 %1330
  %1332 = vrot.lane.b32.xlu0 %v1242, 127
  %v1333 = vpop.permute.xlu0 %1332
  %1334 = vrot.lane.b32.xlu0 %v1243, 127
  %v1335 = vpop.permute.xlu0 %1334
  %1336 = vrot.lane.b32.xlu0 %v1244, 127
  %v1337 = vpop.permute.xlu0 %1336
  %1338 = vrot.lane.b32.xlu0 %v1245, 127
  %v1339 = vpop.permute.xlu0 %1338
  %1340 = vrot.lane.b32.xlu0 %v1246, 127
  %v1341 = vpop.permute.xlu0 %1340
  %1342 = vrot.lane.b32.xlu0 %v1247, 127
  %v1343 = vpop.permute.xlu0 %1342
  %1344 = vrot.lane.b32.xlu0 %v1248, 127
  %v1345 = vpop.permute.xlu0 %1344
  %1346 = vrot.lane.b32.xlu0 %v1249, 127
  %v1347 = vpop.permute.xlu0 %1346
  %1348 = vrot.lane.b32.xlu0 %v1250, 127
  %v1349 = vpop.permute.xlu0 %1348
  %1350 = vrot.lane.b32.xlu0 %v1251, 127
  %v1351 = vpop.permute.xlu0 %1350
  %1352 = vrot.lane.b32.xlu0 %v1252, 127
  %v1353 = vpop.permute.xlu0 %1352
  %1354 = vrot.lane.b32.xlu0 %v1253, 127
  %v1355 = vpop.permute.xlu0 %1354
  %1356 = vrot.lane.b32.xlu0 %v1254, 127
  %v1357 = vpop.permute.xlu0 %1356
  %1358 = vrot.lane.b32.xlu0 %v1255, 127
  %v1359 = vpop.permute.xlu0 %1358
  %1360 = vrot.lane.b32.xlu0 %v1256, 127
  %v1361 = vpop.permute.xlu0 %1360
  %1362 = vrot.lane.b32.xlu0 %v1257, 127
  %v1363 = vpop.permute.xlu0 %1362
  %1364 = vrot.lane.b32.xlu0 %v1258, 127
  %v1365 = vpop.permute.xlu0 %1364
  %1366 = vrot.lane.b32.xlu0 %v1259, 127
  %v1367 = vpop.permute.xlu0 %1366
  %1368 = vrot.lane.b32.xlu0 %v1260, 127
  %v1369 = vpop.permute.xlu0 %1368
  %1370 = vrot.lane.b32.xlu0 %v1261, 127
  %v1371 = vpop.permute.xlu0 %1370
  %1372 = vrot.lane.b32.xlu0 %v1262, 127
  %v1373 = vpop.permute.xlu0 %1372
  %1374 = vrot.lane.b32.xlu0 %v1263, 127
  %v1375 = vpop.permute.xlu0 %1374
  %1376 = vrot.lane.b32.xlu0 %v1264, 127
  %v1377 = vpop.permute.xlu0 %1376
  %1378 = vrot.lane.b32.xlu0 %v1265, 127
  %v1379 = vpop.permute.xlu0 %1378
  %1380 = vrot.lane.b32.xlu0 %v1266, 127
  %v1381 = vpop.permute.xlu0 %1380
  %1382 = vrot.lane.b32.xlu0 %v1267, 127
  %v1383 = vpop.permute.xlu0 %1382
  %1384 = vrot.lane.b32.xlu0 %v1268, 127
  %v1385 = vpop.permute.xlu0 %1384
  %1386 = vrot.lane.b32.xlu0 %v1269, 127
  %v1387 = vpop.permute.xlu0 %1386
  %1388 = vrot.lane.b32.xlu0 %v1270, 127
  %v1389 = vpop.permute.xlu0 %1388
  %1390 = vrot.lane.b32.xlu0 %v1271, 127
  %v1391 = vpop.permute.xlu0 %1390
  %v1432 = vmul.f32 %v1232, %v1313
  %v1433 = vmul.f32 %v1233, %v1315
  %v1434 = vmul.f32 %v1234, %v1317
  %v1435 = vmul.f32 %v1235, %v1319
  %v1436 = vmul.f32 %v1236, %v1321
  %v1437 = vmul.f32 %v1237, %v1323
  %v1438 = vmul.f32 %v1238, %v1325
  %v1439 = vmul.f32 %v1239, %v1327
  %v1440 = vmul.f32 %v1240, %v1329
  %v1441 = vmul.f32 %v1241, %v1331
  %v1442 = vmul.f32 %v1242, %v1333
  %v1443 = vmul.f32 %v1243, %v1335
  %v1444 = vmul.f32 %v1244, %v1337
  %v1445 = vmul.f32 %v1245, %v1339
  %v1446 = vmul.f32 %v1246, %v1341
  %v1447 = vmul.f32 %v1247, %v1343
  %v1448 = vmul.f32 %v1248, %v1345
  %v1449 = vmul.f32 %v1249, %v1347
  %v1450 = vmul.f32 %v1250, %v1349
  %v1451 = vmul.f32 %v1251, %v1351
  %v1452 = vmul.f32 %v1252, %v1353
  %v1453 = vmul.f32 %v1253, %v1355
  %v1454 = vmul.f32 %v1254, %v1357
  %v1455 = vmul.f32 %v1255, %v1359
  %v1456 = vmul.f32 %v1256, %v1361
  %v1457 = vmul.f32 %v1257, %v1363
  %v1458 = vmul.f32 %v1258, %v1365
  %v1459 = vmul.f32 %v1259, %v1367
  %v1460 = vmul.f32 %v1260, %v1369
  %v1461 = vmul.f32 %v1261, %v1371
  %v1462 = vmul.f32 %v1262, %v1373
  %v1463 = vmul.f32 %v1263, %v1375
  %v1464 = vmul.f32 %v1264, %v1377
  %v1465 = vmul.f32 %v1265, %v1379
  %v1466 = vmul.f32 %v1266, %v1381
  %v1467 = vmul.f32 %v1267, %v1383
  %v1468 = vmul.f32 %v1268, %v1385
  %v1469 = vmul.f32 %v1269, %v1387
  %v1470 = vmul.f32 %v1270, %v1389
  %v1471 = vmul.f32 %v1271, %v1391
  %v1472 = vlaneseq
  %v1473 = vshrl.u32 %v1472, 7
  %v1474 = vsub.s32 2, %v1473
  %v1475 = vrot.slane %v11, %v1474
  %v1476 = vmin.f32 %v1475, %v303
  %v1477 = vmin.f32 %v1475, %v307
  %v1478 = vmin.f32 %v1475, %v311
  %v1479 = vmin.f32 %v1475, %v315
  %v1480 = vmin.f32 %v1475, %v319
  %v1481 = vmin.f32 %v1475, %v323
  %v1482 = vmin.f32 %v1475, %v327
  %v1483 = vmin.f32 %v1475, %v331
  %v1484 = vmin.f32 %v1475, %v335
  %v1485 = vmin.f32 %v1475, %v339
  %v1486 = vmin.f32 %v1475, %v343
  %v1487 = vmin.f32 %v1475, %v347
  %v1488 = vmin.f32 %v1475, %v351
  %v1489 = vmin.f32 %v1475, %v355
  %v1490 = vmin.f32 %v1475, %v359
  %v1491 = vmin.f32 %v1475, %v363
  %v1492 = vmin.f32 %v1475, %v367
  %v1493 = vmin.f32 %v1475, %v371
  %v1494 = vmin.f32 %v1475, %v375
  %v1495 = vmin.f32 %v1475, %v379
  %v1496 = vmin.f32 %v1475, %v383
  %v1497 = vmin.f32 %v1475, %v387
  %v1498 = vmin.f32 %v1475, %v391
  %v1499 = vmin.f32 %v1475, %v395
  %v1500 = vmin.f32 %v1475, %v399
  %v1501 = vmin.f32 %v1475, %v403
  %v1502 = vmin.f32 %v1475, %v407
  %v1503 = vmin.f32 %v1475, %v411
  %v1504 = vmin.f32 %v1475, %v415
  %v1505 = vmin.f32 %v1475, %v419
  %v1506 = vmin.f32 %v1475, %v423
  %v1507 = vmin.f32 %v1475, %v427
  %v1508 = vmin.f32 %v1475, %v431
  %v1509 = vmin.f32 %v1475, %v435
  %v1510 = vmin.f32 %v1475, %v439
  %v1511 = vmin.f32 %v1475, %v443
  %v1512 = vmin.f32 %v1475, %v447
  %v1513 = vmin.f32 %v1475, %v451
  %v1514 = vmin.f32 %v1475, %v455
  %v1515 = vmin.f32 %v1475, %v459
  %v1516 = vlaneseq
  %v1517 = vshrl.u32 %v1516, 7
  %v1518 = vsub.s32 0, %v1517
  %v1519 = vrot.slane %v11, %v1518
  %v1520 = vmax.f32 %v1519, %v60
  %v1521 = vmax.f32 %v1519, %v65
  %v1522 = vmax.f32 %v1519, %v70
  %v1523 = vmax.f32 %v1519, %v75
  %v1524 = vmax.f32 %v1519, %v80
  %v1525 = vmax.f32 %v1519, %v85
  %v1526 = vmax.f32 %v1519, %v90
  %v1527 = vmax.f32 %v1519, %v95
  %v1528 = vmax.f32 %v1519, %v100
  %v1529 = vmax.f32 %v1519, %v105
  %v1530 = vmax.f32 %v1519, %v110
  %v1531 = vmax.f32 %v1519, %v115
  %v1532 = vmax.f32 %v1519, %v120
  %v1533 = vmax.f32 %v1519, %v125
  %v1534 = vmax.f32 %v1519, %v130
  %v1535 = vmax.f32 %v1519, %v135
  %v1536 = vmax.f32 %v1519, %v140
  %v1537 = vmax.f32 %v1519, %v145
  %v1538 = vmax.f32 %v1519, %v150
  %v1539 = vmax.f32 %v1519, %v155
  %v1540 = vmax.f32 %v1519, %v160
  %v1541 = vmax.f32 %v1519, %v165
  %v1542 = vmax.f32 %v1519, %v170
  %v1543 = vmax.f32 %v1519, %v175
  %v1544 = vmax.f32 %v1519, %v180
  %v1545 = vmax.f32 %v1519, %v185
  %v1546 = vmax.f32 %v1519, %v190
  %v1547 = vmax.f32 %v1519, %v195
  %v1548 = vmax.f32 %v1519, %v200
  %v1549 = vmax.f32 %v1519, %v205
  %v1550 = vmax.f32 %v1519, %v210
  %v1551 = vmax.f32 %v1519, %v215
  %v1552 = vmax.f32 %v1519, %v220
  %v1553 = vmax.f32 %v1519, %v225
  %v1554 = vmax.f32 %v1519, %v230
  %v1555 = vmax.f32 %v1519, %v235
  %v1556 = vmax.f32 %v1519, %v240
  %v1557 = vmax.f32 %v1519, %v245
  %v1558 = vmax.f32 %v1519, %v250
  %v1559 = vmax.f32 %v1519, %v255
  %v1560 = vsub.f32 %v1476, %v1520
  %v1561 = vsub.f32 %v1477, %v1521
  %v1562 = vsub.f32 %v1478, %v1522
  %v1563 = vsub.f32 %v1479, %v1523
  %v1564 = vsub.f32 %v1480, %v1524
  %v1565 = vsub.f32 %v1481, %v1525
  %v1566 = vsub.f32 %v1482, %v1526
  %v1567 = vsub.f32 %v1483, %v1527
  %v1568 = vsub.f32 %v1484, %v1528
  %v1569 = vsub.f32 %v1485, %v1529
  %v1570 = vsub.f32 %v1486, %v1530
  %v1571 = vsub.f32 %v1487, %v1531
  %v1572 = vsub.f32 %v1488, %v1532
  %v1573 = vsub.f32 %v1489, %v1533
  %v1574 = vsub.f32 %v1490, %v1534
  %v1575 = vsub.f32 %v1491, %v1535
  %v1576 = vsub.f32 %v1492, %v1536
  %v1577 = vsub.f32 %v1493, %v1537
  %v1578 = vsub.f32 %v1494, %v1538
  %v1579 = vsub.f32 %v1495, %v1539
  %v1580 = vsub.f32 %v1496, %v1540
  %v1581 = vsub.f32 %v1497, %v1541
  %v1582 = vsub.f32 %v1498, %v1542
  %v1583 = vsub.f32 %v1499, %v1543
  %v1584 = vsub.f32 %v1500, %v1544
  %v1585 = vsub.f32 %v1501, %v1545
  %v1586 = vsub.f32 %v1502, %v1546
  %v1587 = vsub.f32 %v1503, %v1547
  %v1588 = vsub.f32 %v1504, %v1548
  %v1589 = vsub.f32 %v1505, %v1549
  %v1590 = vsub.f32 %v1506, %v1550
  %v1591 = vsub.f32 %v1507, %v1551
  %v1592 = vsub.f32 %v1508, %v1552
  %v1593 = vsub.f32 %v1509, %v1553
  %v1594 = vsub.f32 %v1510, %v1554
  %v1595 = vsub.f32 %v1511, %v1555
  %v1596 = vsub.f32 %v1512, %v1556
  %v1597 = vsub.f32 %v1513, %v1557
  %v1598 = vsub.f32 %v1514, %v1558
  %v1599 = vsub.f32 %v1515, %v1559
  %v1600 = vmax.f32 %v1560, 0.0
  %v1601 = vmax.f32 %v1561, 0.0
  %v1602 = vmax.f32 %v1562, 0.0
  %v1603 = vmax.f32 %v1563, 0.0
  %v1604 = vmax.f32 %v1564, 0.0
  %v1605 = vmax.f32 %v1565, 0.0
  %v1606 = vmax.f32 %v1566, 0.0
  %v1607 = vmax.f32 %v1567, 0.0
  %v1608 = vmax.f32 %v1568, 0.0
  %v1609 = vmax.f32 %v1569, 0.0
  %v1610 = vmax.f32 %v1570, 0.0
  %v1611 = vmax.f32 %v1571, 0.0
  %v1612 = vmax.f32 %v1572, 0.0
  %v1613 = vmax.f32 %v1573, 0.0
  %v1614 = vmax.f32 %v1574, 0.0
  %v1615 = vmax.f32 %v1575, 0.0
  %v1616 = vmax.f32 %v1576, 0.0
  %v1617 = vmax.f32 %v1577, 0.0
  %v1618 = vmax.f32 %v1578, 0.0
  %v1619 = vmax.f32 %v1579, 0.0
  %v1620 = vmax.f32 %v1580, 0.0
  %v1621 = vmax.f32 %v1581, 0.0
  %v1622 = vmax.f32 %v1582, 0.0
  %v1623 = vmax.f32 %v1583, 0.0
  %v1624 = vmax.f32 %v1584, 0.0
  %v1625 = vmax.f32 %v1585, 0.0
  %v1626 = vmax.f32 %v1586, 0.0
  %v1627 = vmax.f32 %v1587, 0.0
  %v1628 = vmax.f32 %v1588, 0.0
  %v1629 = vmax.f32 %v1589, 0.0
  %v1630 = vmax.f32 %v1590, 0.0
  %v1631 = vmax.f32 %v1591, 0.0
  %v1632 = vmax.f32 %v1592, 0.0
  %v1633 = vmax.f32 %v1593, 0.0
  %v1634 = vmax.f32 %v1594, 0.0
  %v1635 = vmax.f32 %v1595, 0.0
  %v1636 = vmax.f32 %v1596, 0.0
  %v1637 = vmax.f32 %v1597, 0.0
  %v1638 = vmax.f32 %v1598, 0.0
  %v1639 = vmax.f32 %v1599, 0.0
  %v1640 = vlaneseq
  %v1641 = vshrl.u32 %v1640, 7
  %v1642 = vsub.s32 3, %v1641
  %v1643 = vrot.slane %v11, %v1642
  %v1644 = vmin.f32 %v1643, %v787
  %v1645 = vmin.f32 %v1643, %v791
  %v1646 = vmin.f32 %v1643, %v795
  %v1647 = vmin.f32 %v1643, %v799
  %v1648 = vmin.f32 %v1643, %v803
  %v1649 = vmin.f32 %v1643, %v807
  %v1650 = vmin.f32 %v1643, %v811
  %v1651 = vmin.f32 %v1643, %v815
  %v1652 = vmin.f32 %v1643, %v819
  %v1653 = vmin.f32 %v1643, %v823
  %v1654 = vmin.f32 %v1643, %v827
  %v1655 = vmin.f32 %v1643, %v831
  %v1656 = vmin.f32 %v1643, %v835
  %v1657 = vmin.f32 %v1643, %v839
  %v1658 = vmin.f32 %v1643, %v843
  %v1659 = vmin.f32 %v1643, %v847
  %v1660 = vmin.f32 %v1643, %v851
  %v1661 = vmin.f32 %v1643, %v855
  %v1662 = vmin.f32 %v1643, %v859
  %v1663 = vmin.f32 %v1643, %v863
  %v1664 = vmin.f32 %v1643, %v867
  %v1665 = vmin.f32 %v1643, %v871
  %v1666 = vmin.f32 %v1643, %v875
  %v1667 = vmin.f32 %v1643, %v879
  %v1668 = vmin.f32 %v1643, %v883
  %v1669 = vmin.f32 %v1643, %v887
  %v1670 = vmin.f32 %v1643, %v891
  %v1671 = vmin.f32 %v1643, %v895
  %v1672 = vmin.f32 %v1643, %v899
  %v1673 = vmin.f32 %v1643, %v903
  %v1674 = vmin.f32 %v1643, %v907
  %v1675 = vmin.f32 %v1643, %v911
  %v1676 = vmin.f32 %v1643, %v915
  %v1677 = vmin.f32 %v1643, %v919
  %v1678 = vmin.f32 %v1643, %v923
  %v1679 = vmin.f32 %v1643, %v927
  %v1680 = vmin.f32 %v1643, %v931
  %v1681 = vmin.f32 %v1643, %v935
  %v1682 = vmin.f32 %v1643, %v939
  %v1683 = vmin.f32 %v1643, %v943
  %v1684 = vlaneseq
  %v1685 = vshrl.u32 %v1684, 7
  %v1686 = vsub.s32 1, %v1685
  %v1687 = vrot.slane %v11, %v1686
  %v1688 = vmax.f32 %v1687, %v543
  %v1689 = vmax.f32 %v1687, %v547
  %v1690 = vmax.f32 %v1687, %v551
  %v1691 = vmax.f32 %v1687, %v555
  %v1692 = vmax.f32 %v1687, %v559
  %v1693 = vmax.f32 %v1687, %v563
  %v1694 = vmax.f32 %v1687, %v567
  %v1695 = vmax.f32 %v1687, %v571
  %v1696 = vmax.f32 %v1687, %v575
  %v1697 = vmax.f32 %v1687, %v579
  %v1698 = vmax.f32 %v1687, %v583
  %v1699 = vmax.f32 %v1687, %v587
  %v1700 = vmax.f32 %v1687, %v591
  %v1701 = vmax.f32 %v1687, %v595
  %v1702 = vmax.f32 %v1687, %v599
  %v1703 = vmax.f32 %v1687, %v603
  %v1704 = vmax.f32 %v1687, %v607
  %v1705 = vmax.f32 %v1687, %v611
  %v1706 = vmax.f32 %v1687, %v615
  %v1707 = vmax.f32 %v1687, %v619
  %v1708 = vmax.f32 %v1687, %v623
  %v1709 = vmax.f32 %v1687, %v627
  %v1710 = vmax.f32 %v1687, %v631
  %v1711 = vmax.f32 %v1687, %v635
  %v1712 = vmax.f32 %v1687, %v639
  %v1713 = vmax.f32 %v1687, %v643
  %v1714 = vmax.f32 %v1687, %v647
  %v1715 = vmax.f32 %v1687, %v651
  %v1716 = vmax.f32 %v1687, %v655
  %v1717 = vmax.f32 %v1687, %v659
  %v1718 = vmax.f32 %v1687, %v663
  %v1719 = vmax.f32 %v1687, %v667
  %v1720 = vmax.f32 %v1687, %v671
  %v1721 = vmax.f32 %v1687, %v675
  %v1722 = vmax.f32 %v1687, %v679
  %v1723 = vmax.f32 %v1687, %v683
  %v1724 = vmax.f32 %v1687, %v687
  %v1725 = vmax.f32 %v1687, %v691
  %v1726 = vmax.f32 %v1687, %v695
  %v1727 = vmax.f32 %v1687, %v699
  %v1728 = vsub.f32 %v1644, %v1688
  %v1729 = vsub.f32 %v1645, %v1689
  %v1730 = vsub.f32 %v1646, %v1690
  %v1731 = vsub.f32 %v1647, %v1691
  %v1732 = vsub.f32 %v1648, %v1692
  %v1733 = vsub.f32 %v1649, %v1693
  %v1734 = vsub.f32 %v1650, %v1694
  %v1735 = vsub.f32 %v1651, %v1695
  %v1736 = vsub.f32 %v1652, %v1696
  %v1737 = vsub.f32 %v1653, %v1697
  %v1738 = vsub.f32 %v1654, %v1698
  %v1739 = vsub.f32 %v1655, %v1699
  %v1740 = vsub.f32 %v1656, %v1700
  %v1741 = vsub.f32 %v1657, %v1701
  %v1742 = vsub.f32 %v1658, %v1702
  %v1743 = vsub.f32 %v1659, %v1703
  %v1744 = vsub.f32 %v1660, %v1704
  %v1745 = vsub.f32 %v1661, %v1705
  %v1746 = vsub.f32 %v1662, %v1706
  %v1747 = vsub.f32 %v1663, %v1707
  %v1748 = vsub.f32 %v1664, %v1708
  %v1749 = vsub.f32 %v1665, %v1709
  %v1750 = vsub.f32 %v1666, %v1710
  %v1751 = vsub.f32 %v1667, %v1711
  %v1752 = vsub.f32 %v1668, %v1712
  %v1753 = vsub.f32 %v1669, %v1713
  %v1754 = vsub.f32 %v1670, %v1714
  %v1755 = vsub.f32 %v1671, %v1715
  %v1756 = vsub.f32 %v1672, %v1716
  %v1757 = vsub.f32 %v1673, %v1717
  %v1758 = vsub.f32 %v1674, %v1718
  %v1759 = vsub.f32 %v1675, %v1719
  %v1760 = vsub.f32 %v1676, %v1720
  %v1761 = vsub.f32 %v1677, %v1721
  %v1762 = vsub.f32 %v1678, %v1722
  %v1763 = vsub.f32 %v1679, %v1723
  %v1764 = vsub.f32 %v1680, %v1724
  %v1765 = vsub.f32 %v1681, %v1725
  %v1766 = vsub.f32 %v1682, %v1726
  %v1767 = vsub.f32 %v1683, %v1727
  %v1768 = vmax.f32 %v1728, 0.0
  %v1769 = vmax.f32 %v1729, 0.0
  %v1770 = vmax.f32 %v1730, 0.0
  %v1771 = vmax.f32 %v1731, 0.0
  %v1772 = vmax.f32 %v1732, 0.0
  %v1773 = vmax.f32 %v1733, 0.0
  %v1774 = vmax.f32 %v1734, 0.0
  %v1775 = vmax.f32 %v1735, 0.0
  %v1776 = vmax.f32 %v1736, 0.0
  %v1777 = vmax.f32 %v1737, 0.0
  %v1778 = vmax.f32 %v1738, 0.0
  %v1779 = vmax.f32 %v1739, 0.0
  %v1780 = vmax.f32 %v1740, 0.0
  %v1781 = vmax.f32 %v1741, 0.0
  %v1782 = vmax.f32 %v1742, 0.0
  %v1783 = vmax.f32 %v1743, 0.0
  %v1784 = vmax.f32 %v1744, 0.0
  %v1785 = vmax.f32 %v1745, 0.0
  %v1786 = vmax.f32 %v1746, 0.0
  %v1787 = vmax.f32 %v1747, 0.0
  %v1788 = vmax.f32 %v1748, 0.0
  %v1789 = vmax.f32 %v1749, 0.0
  %v1790 = vmax.f32 %v1750, 0.0
  %v1791 = vmax.f32 %v1751, 0.0
  %v1792 = vmax.f32 %v1752, 0.0
  %v1793 = vmax.f32 %v1753, 0.0
  %v1794 = vmax.f32 %v1754, 0.0
  %v1795 = vmax.f32 %v1755, 0.0
  %v1796 = vmax.f32 %v1756, 0.0
  %v1797 = vmax.f32 %v1757, 0.0
  %v1798 = vmax.f32 %v1758, 0.0
  %v1799 = vmax.f32 %v1759, 0.0
  %v1800 = vmax.f32 %v1760, 0.0
  %v1801 = vmax.f32 %v1761, 0.0
  %v1802 = vmax.f32 %v1762, 0.0
  %v1803 = vmax.f32 %v1763, 0.0
  %v1804 = vmax.f32 %v1764, 0.0
  %v1805 = vmax.f32 %v1765, 0.0
  %v1806 = vmax.f32 %v1766, 0.0
  %v1807 = vmax.f32 %v1767, 0.0
  %v1808 = vmul.f32 %v1600, %v1768
  %v1809 = vmul.f32 %v1601, %v1769
  %v1810 = vmul.f32 %v1602, %v1770
  %v1811 = vmul.f32 %v1603, %v1771
  %v1812 = vmul.f32 %v1604, %v1772
  %v1813 = vmul.f32 %v1605, %v1773
  %v1814 = vmul.f32 %v1606, %v1774
  %v1815 = vmul.f32 %v1607, %v1775
  %v1816 = vmul.f32 %v1608, %v1776
  %v1817 = vmul.f32 %v1609, %v1777
  %v1818 = vmul.f32 %v1610, %v1778
  %v1819 = vmul.f32 %v1611, %v1779
  %v1820 = vmul.f32 %v1612, %v1780
  %v1821 = vmul.f32 %v1613, %v1781
  %v1822 = vmul.f32 %v1614, %v1782
  %v1823 = vmul.f32 %v1615, %v1783
  %v1824 = vmul.f32 %v1616, %v1784
  %v1825 = vmul.f32 %v1617, %v1785
  %v1826 = vmul.f32 %v1618, %v1786
  %v1827 = vmul.f32 %v1619, %v1787
  %v1828 = vmul.f32 %v1620, %v1788
  %v1829 = vmul.f32 %v1621, %v1789
  %v1830 = vmul.f32 %v1622, %v1790
  %v1831 = vmul.f32 %v1623, %v1791
  %v1832 = vmul.f32 %v1624, %v1792
  %v1833 = vmul.f32 %v1625, %v1793
  %v1834 = vmul.f32 %v1626, %v1794
  %v1835 = vmul.f32 %v1627, %v1795
  %v1836 = vmul.f32 %v1628, %v1796
  %v1837 = vmul.f32 %v1629, %v1797
  %v1838 = vmul.f32 %v1630, %v1798
  %v1839 = vmul.f32 %v1631, %v1799
  %v1840 = vmul.f32 %v1632, %v1800
  %v1841 = vmul.f32 %v1633, %v1801
  %v1842 = vmul.f32 %v1634, %v1802
  %v1843 = vmul.f32 %v1635, %v1803
  %v1844 = vmul.f32 %v1636, %v1804
  %v1845 = vmul.f32 %v1637, %v1805
  %v1846 = vmul.f32 %v1638, %v1806
  %v1847 = vmul.f32 %v1639, %v1807
  %v1848 = vlaneseq
  %v1849 = vshrl.u32 %v1848, 7
  %v1850 = vsub.s32 2, %v1849
  %v1851 = vrot.slane %v1111, %v1850
  %1853 = vset.pattern.permute.xlu0 2
  %1854 = vperm.xlu0 %1853, %v1432
  %v1855 = vpop.permute.xlu0 %1854
  %1858 = vset.pattern.permute.xlu0 2
  %1859 = vperm.xlu0 %1858, %v1433
  %v1860 = vpop.permute.xlu0 %1859
  %1863 = vset.pattern.permute.xlu0 2
  %1864 = vperm.xlu0 %1863, %v1434
  %v1865 = vpop.permute.xlu0 %1864
  %1868 = vset.pattern.permute.xlu0 2
  %1869 = vperm.xlu0 %1868, %v1435
  %v1870 = vpop.permute.xlu0 %1869
  %1873 = vset.pattern.permute.xlu0 2
  %1874 = vperm.xlu0 %1873, %v1436
  %v1875 = vpop.permute.xlu0 %1874
  %1878 = vset.pattern.permute.xlu0 2
  %1879 = vperm.xlu0 %1878, %v1437
  %v1880 = vpop.permute.xlu0 %1879
  %1883 = vset.pattern.permute.xlu0 2
  %1884 = vperm.xlu0 %1883, %v1438
  %v1885 = vpop.permute.xlu0 %1884
  %1888 = vset.pattern.permute.xlu0 2
  %1889 = vperm.xlu0 %1888, %v1439
  %v1890 = vpop.permute.xlu0 %1889
  %1893 = vset.pattern.permute.xlu0 2
  %1894 = vperm.xlu0 %1893, %v1440
  %v1895 = vpop.permute.xlu0 %1894
  %1898 = vset.pattern.permute.xlu0 2
  %1899 = vperm.xlu0 %1898, %v1441
  %v1900 = vpop.permute.xlu0 %1899
  %1903 = vset.pattern.permute.xlu0 2
  %1904 = vperm.xlu0 %1903, %v1442
  %v1905 = vpop.permute.xlu0 %1904
  %1908 = vset.pattern.permute.xlu0 2
  %1909 = vperm.xlu0 %1908, %v1443
  %v1910 = vpop.permute.xlu0 %1909
  %1913 = vset.pattern.permute.xlu0 2
  %1914 = vperm.xlu0 %1913, %v1444
  %v1915 = vpop.permute.xlu0 %1914
  %1918 = vset.pattern.permute.xlu0 2
  %1919 = vperm.xlu0 %1918, %v1445
  %v1920 = vpop.permute.xlu0 %1919
  %1923 = vset.pattern.permute.xlu0 2
  %1924 = vperm.xlu0 %1923, %v1446
  %v1925 = vpop.permute.xlu0 %1924
  %1928 = vset.pattern.permute.xlu0 2
  %1929 = vperm.xlu0 %1928, %v1447
  %v1930 = vpop.permute.xlu0 %1929
  %1933 = vset.pattern.permute.xlu0 2
  %1934 = vperm.xlu0 %1933, %v1448
  %v1935 = vpop.permute.xlu0 %1934
  %1938 = vset.pattern.permute.xlu0 2
  %1939 = vperm.xlu0 %1938, %v1449
  %v1940 = vpop.permute.xlu0 %1939
  %1943 = vset.pattern.permute.xlu0 2
  %1944 = vperm.xlu0 %1943, %v1450
  %v1945 = vpop.permute.xlu0 %1944
  %1948 = vset.pattern.permute.xlu0 2
  %1949 = vperm.xlu0 %1948, %v1451
  %v1950 = vpop.permute.xlu0 %1949
  %1953 = vset.pattern.permute.xlu0 2
  %1954 = vperm.xlu0 %1953, %v1452
  %v1955 = vpop.permute.xlu0 %1954
  %1958 = vset.pattern.permute.xlu0 2
  %1959 = vperm.xlu0 %1958, %v1453
  %v1960 = vpop.permute.xlu0 %1959
  %1963 = vset.pattern.permute.xlu0 2
  %1964 = vperm.xlu0 %1963, %v1454
  %v1965 = vpop.permute.xlu0 %1964
  %1968 = vset.pattern.permute.xlu0 2
  %1969 = vperm.xlu0 %1968, %v1455
  %v1970 = vpop.permute.xlu0 %1969
  %1973 = vset.pattern.permute.xlu0 2
  %1974 = vperm.xlu0 %1973, %v1456
  %v1975 = vpop.permute.xlu0 %1974
  %1978 = vset.pattern.permute.xlu0 2
  %1979 = vperm.xlu0 %1978, %v1457
  %v1980 = vpop.permute.xlu0 %1979
  %1983 = vset.pattern.permute.xlu0 2
  %1984 = vperm.xlu0 %1983, %v1458
  %v1985 = vpop.permute.xlu0 %1984
  %1988 = vset.pattern.permute.xlu0 2
  %1989 = vperm.xlu0 %1988, %v1459
  %v1990 = vpop.permute.xlu0 %1989
  %1993 = vset.pattern.permute.xlu0 2
  %1994 = vperm.xlu0 %1993, %v1460
  %v1995 = vpop.permute.xlu0 %1994
  %1998 = vset.pattern.permute.xlu0 2
  %1999 = vperm.xlu0 %1998, %v1461
  %v2000 = vpop.permute.xlu0 %1999
  %2003 = vset.pattern.permute.xlu0 2
  %2004 = vperm.xlu0 %2003, %v1462
  %v2005 = vpop.permute.xlu0 %2004
  %2008 = vset.pattern.permute.xlu0 2
  %2009 = vperm.xlu0 %2008, %v1463
  %v2010 = vpop.permute.xlu0 %2009
  %2013 = vset.pattern.permute.xlu0 2
  %2014 = vperm.xlu0 %2013, %v1464
  %v2015 = vpop.permute.xlu0 %2014
  %2018 = vset.pattern.permute.xlu0 2
  %2019 = vperm.xlu0 %2018, %v1465
  %v2020 = vpop.permute.xlu0 %2019
  %2023 = vset.pattern.permute.xlu0 2
  %2024 = vperm.xlu0 %2023, %v1466
  %v2025 = vpop.permute.xlu0 %2024
  %2028 = vset.pattern.permute.xlu0 2
  %2029 = vperm.xlu0 %2028, %v1467
  %v2030 = vpop.permute.xlu0 %2029
  %2033 = vset.pattern.permute.xlu0 2
  %2034 = vperm.xlu0 %2033, %v1468
  %v2035 = vpop.permute.xlu0 %2034
  %2038 = vset.pattern.permute.xlu0 2
  %2039 = vperm.xlu0 %2038, %v1469
  %v2040 = vpop.permute.xlu0 %2039
  %2043 = vset.pattern.permute.xlu0 2
  %2044 = vperm.xlu0 %2043, %v1470
  %v2045 = vpop.permute.xlu0 %2044
  %2048 = vset.pattern.permute.xlu0 2
  %2049 = vperm.xlu0 %2048, %v1471
  %v2050 = vpop.permute.xlu0 %2049
  %v2052 = vadd.f32 %v1851, %v1855
  %v2053 = vadd.f32 %v1851, %v1860
  %v2054 = vadd.f32 %v1851, %v1865
  %v2055 = vadd.f32 %v1851, %v1870
  %v2056 = vadd.f32 %v1851, %v1875
  %v2057 = vadd.f32 %v1851, %v1880
  %v2058 = vadd.f32 %v1851, %v1885
  %v2059 = vadd.f32 %v1851, %v1890
  %v2060 = vadd.f32 %v1851, %v1895
  %v2061 = vadd.f32 %v1851, %v1900
  %v2062 = vadd.f32 %v1851, %v1905
  %v2063 = vadd.f32 %v1851, %v1910
  %v2064 = vadd.f32 %v1851, %v1915
  %v2065 = vadd.f32 %v1851, %v1920
  %v2066 = vadd.f32 %v1851, %v1925
  %v2067 = vadd.f32 %v1851, %v1930
  %v2068 = vadd.f32 %v1851, %v1935
  %v2069 = vadd.f32 %v1851, %v1940
  %v2070 = vadd.f32 %v1851, %v1945
  %v2071 = vadd.f32 %v1851, %v1950
  %v2072 = vadd.f32 %v1851, %v1955
  %v2073 = vadd.f32 %v1851, %v1960
  %v2074 = vadd.f32 %v1851, %v1965
  %v2075 = vadd.f32 %v1851, %v1970
  %v2076 = vadd.f32 %v1851, %v1975
  %v2077 = vadd.f32 %v1851, %v1980
  %v2078 = vadd.f32 %v1851, %v1985
  %v2079 = vadd.f32 %v1851, %v1990
  %v2080 = vadd.f32 %v1851, %v1995
  %v2081 = vadd.f32 %v1851, %v2000
  %v2082 = vadd.f32 %v1851, %v2005
  %v2083 = vadd.f32 %v1851, %v2010
  %v2084 = vadd.f32 %v1851, %v2015
  %v2085 = vadd.f32 %v1851, %v2020
  %v2086 = vadd.f32 %v1851, %v2025
  %v2087 = vadd.f32 %v1851, %v2030
  %v2088 = vadd.f32 %v1851, %v2035
  %v2089 = vadd.f32 %v1851, %v2040
  %v2090 = vadd.f32 %v1851, %v2045
  %v2091 = vadd.f32 %v1851, %v2050
  %v2092 = vsub.f32 %v2052, %v1808
  %v2093 = vsub.f32 %v2053, %v1809
  %v2094 = vsub.f32 %v2054, %v1810
  %v2095 = vsub.f32 %v2055, %v1811
  %v2096 = vsub.f32 %v2056, %v1812
  %v2097 = vsub.f32 %v2057, %v1813
  %v2098 = vsub.f32 %v2058, %v1814
  %v2099 = vsub.f32 %v2059, %v1815
  %v2100 = vsub.f32 %v2060, %v1816
  %v2101 = vsub.f32 %v2061, %v1817
  %v2102 = vsub.f32 %v2062, %v1818
  %v2103 = vsub.f32 %v2063, %v1819
  %v2104 = vsub.f32 %v2064, %v1820
  %v2105 = vsub.f32 %v2065, %v1821
  %v2106 = vsub.f32 %v2066, %v1822
  %v2107 = vsub.f32 %v2067, %v1823
  %v2108 = vsub.f32 %v2068, %v1824
  %v2109 = vsub.f32 %v2069, %v1825
  %v2110 = vsub.f32 %v2070, %v1826
  %v2111 = vsub.f32 %v2071, %v1827
  %v2112 = vsub.f32 %v2072, %v1828
  %v2113 = vsub.f32 %v2073, %v1829
  %v2114 = vsub.f32 %v2074, %v1830
  %v2115 = vsub.f32 %v2075, %v1831
  %v2116 = vsub.f32 %v2076, %v1832
  %v2117 = vsub.f32 %v2077, %v1833
  %v2118 = vsub.f32 %v2078, %v1834
  %v2119 = vsub.f32 %v2079, %v1835
  %v2120 = vsub.f32 %v2080, %v1836
  %v2121 = vsub.f32 %v2081, %v1837
  %v2122 = vsub.f32 %v2082, %v1838
  %v2123 = vsub.f32 %v2083, %v1839
  %v2124 = vsub.f32 %v2084, %v1840
  %v2125 = vsub.f32 %v2085, %v1841
  %v2126 = vsub.f32 %v2086, %v1842
  %v2127 = vsub.f32 %v2087, %v1843
  %v2128 = vsub.f32 %v2088, %v1844
  %v2129 = vsub.f32 %v2089, %v1845
  %v2130 = vsub.f32 %v2090, %v1846
  %v2131 = vsub.f32 %v2091, %v1847
  %2132 = vset.pattern.permute.xlu0 6
  %2133 = vperm.xlu0 %2132, %v12
  %v2134 = vpop.permute.xlu0 %2133
  %2136 = vset.pattern.permute.xlu0 6
  %2137 = vperm.xlu0 %2136, %v13
  %v2138 = vpop.permute.xlu0 %2137
  %2140 = vset.pattern.permute.xlu0 6
  %2141 = vperm.xlu0 %2140, %v14
  %v2142 = vpop.permute.xlu0 %2141
  %2144 = vset.pattern.permute.xlu0 6
  %2145 = vperm.xlu0 %2144, %v15
  %v2146 = vpop.permute.xlu0 %2145
  %2148 = vset.pattern.permute.xlu0 6
  %2149 = vperm.xlu0 %2148, %v16
  %v2150 = vpop.permute.xlu0 %2149
  %2152 = vset.pattern.permute.xlu0 6
  %2153 = vperm.xlu0 %2152, %v17
  %v2154 = vpop.permute.xlu0 %2153
  %2156 = vset.pattern.permute.xlu0 6
  %2157 = vperm.xlu0 %2156, %v18
  %v2158 = vpop.permute.xlu0 %2157
  %2160 = vset.pattern.permute.xlu0 6
  %2161 = vperm.xlu0 %2160, %v19
  %v2162 = vpop.permute.xlu0 %2161
  %2164 = vset.pattern.permute.xlu0 6
  %2165 = vperm.xlu0 %2164, %v20
  %v2166 = vpop.permute.xlu0 %2165
  %2168 = vset.pattern.permute.xlu0 6
  %2169 = vperm.xlu0 %2168, %v21
  %v2170 = vpop.permute.xlu0 %2169
  %2172 = vset.pattern.permute.xlu0 6
  %2173 = vperm.xlu0 %2172, %v22
  %v2174 = vpop.permute.xlu0 %2173
  %2176 = vset.pattern.permute.xlu0 6
  %2177 = vperm.xlu0 %2176, %v23
  %v2178 = vpop.permute.xlu0 %2177
  %2180 = vset.pattern.permute.xlu0 6
  %2181 = vperm.xlu0 %2180, %v24
  %v2182 = vpop.permute.xlu0 %2181
  %2184 = vset.pattern.permute.xlu0 6
  %2185 = vperm.xlu0 %2184, %v25
  %v2186 = vpop.permute.xlu0 %2185
  %2188 = vset.pattern.permute.xlu0 6
  %2189 = vperm.xlu0 %2188, %v26
  %v2190 = vpop.permute.xlu0 %2189
  %2192 = vset.pattern.permute.xlu0 6
  %2193 = vperm.xlu0 %2192, %v27
  %v2194 = vpop.permute.xlu0 %2193
  %2196 = vset.pattern.permute.xlu0 6
  %2197 = vperm.xlu0 %2196, %v28
  %v2198 = vpop.permute.xlu0 %2197
  %2200 = vset.pattern.permute.xlu0 6
  %2201 = vperm.xlu0 %2200, %v29
  %v2202 = vpop.permute.xlu0 %2201
  %2204 = vset.pattern.permute.xlu0 6
  %2205 = vperm.xlu0 %2204, %v30
  %v2206 = vpop.permute.xlu0 %2205
  %2208 = vset.pattern.permute.xlu0 6
  %2209 = vperm.xlu0 %2208, %v31
  %v2210 = vpop.permute.xlu0 %2209
  %2212 = vset.pattern.permute.xlu0 6
  %2213 = vperm.xlu0 %2212, %v32
  %v2214 = vpop.permute.xlu0 %2213
  %2216 = vset.pattern.permute.xlu0 6
  %2217 = vperm.xlu0 %2216, %v33
  %v2218 = vpop.permute.xlu0 %2217
  %2220 = vset.pattern.permute.xlu0 6
  %2221 = vperm.xlu0 %2220, %v34
  %v2222 = vpop.permute.xlu0 %2221
  %2224 = vset.pattern.permute.xlu0 6
  %2225 = vperm.xlu0 %2224, %v35
  %v2226 = vpop.permute.xlu0 %2225
  %2228 = vset.pattern.permute.xlu0 6
  %2229 = vperm.xlu0 %2228, %v36
  %v2230 = vpop.permute.xlu0 %2229
  %2232 = vset.pattern.permute.xlu0 6
  %2233 = vperm.xlu0 %2232, %v37
  %v2234 = vpop.permute.xlu0 %2233
  %2236 = vset.pattern.permute.xlu0 6
  %2237 = vperm.xlu0 %2236, %v38
  %v2238 = vpop.permute.xlu0 %2237
  %2240 = vset.pattern.permute.xlu0 6
  %2241 = vperm.xlu0 %2240, %v39
  %v2242 = vpop.permute.xlu0 %2241
  %2244 = vset.pattern.permute.xlu0 6
  %2245 = vperm.xlu0 %2244, %v40
  %v2246 = vpop.permute.xlu0 %2245
  %2248 = vset.pattern.permute.xlu0 6
  %2249 = vperm.xlu0 %2248, %v41
  %v2250 = vpop.permute.xlu0 %2249
  %2252 = vset.pattern.permute.xlu0 6
  %2253 = vperm.xlu0 %2252, %v42
  %v2254 = vpop.permute.xlu0 %2253
  %2256 = vset.pattern.permute.xlu0 6
  %2257 = vperm.xlu0 %2256, %v43
  %v2258 = vpop.permute.xlu0 %2257
  %2260 = vset.pattern.permute.xlu0 6
  %2261 = vperm.xlu0 %2260, %v44
  %v2262 = vpop.permute.xlu0 %2261
  %2264 = vset.pattern.permute.xlu0 6
  %2265 = vperm.xlu0 %2264, %v45
  %v2266 = vpop.permute.xlu0 %2265
  %2268 = vset.pattern.permute.xlu0 6
  %2269 = vperm.xlu0 %2268, %v46
  %v2270 = vpop.permute.xlu0 %2269
  %2272 = vset.pattern.permute.xlu0 6
  %2273 = vperm.xlu0 %2272, %v47
  %v2274 = vpop.permute.xlu0 %2273
  %2276 = vset.pattern.permute.xlu0 6
  %2277 = vperm.xlu0 %2276, %v48
  %v2278 = vpop.permute.xlu0 %2277
  %2280 = vset.pattern.permute.xlu0 6
  %2281 = vperm.xlu0 %2280, %v49
  %v2282 = vpop.permute.xlu0 %2281
  %2284 = vset.pattern.permute.xlu0 6
  %2285 = vperm.xlu0 %2284, %v50
  %v2286 = vpop.permute.xlu0 %2285
  %2288 = vset.pattern.permute.xlu0 6
  %2289 = vperm.xlu0 %2288, %v51
  %v2290 = vpop.permute.xlu0 %2289
  %v2292 = vmul.f32 %v2134, %v2092
  %v2293 = vmul.f32 %v2138, %v2093
  %v2294 = vmul.f32 %v2142, %v2094
  %v2295 = vmul.f32 %v2146, %v2095
  %v2296 = vmul.f32 %v2150, %v2096
  %v2297 = vmul.f32 %v2154, %v2097
  %v2298 = vmul.f32 %v2158, %v2098
  %v2299 = vmul.f32 %v2162, %v2099
  %v2300 = vmul.f32 %v2166, %v2100
  %v2301 = vmul.f32 %v2170, %v2101
  %v2302 = vmul.f32 %v2174, %v2102
  %v2303 = vmul.f32 %v2178, %v2103
  %v2304 = vmul.f32 %v2182, %v2104
  %v2305 = vmul.f32 %v2186, %v2105
  %v2306 = vmul.f32 %v2190, %v2106
  %v2307 = vmul.f32 %v2194, %v2107
  %v2308 = vmul.f32 %v2198, %v2108
  %v2309 = vmul.f32 %v2202, %v2109
  %v2310 = vmul.f32 %v2206, %v2110
  %v2311 = vmul.f32 %v2210, %v2111
  %v2312 = vmul.f32 %v2214, %v2112
  %v2313 = vmul.f32 %v2218, %v2113
  %v2314 = vmul.f32 %v2222, %v2114
  %v2315 = vmul.f32 %v2226, %v2115
  %v2316 = vmul.f32 %v2230, %v2116
  %v2317 = vmul.f32 %v2234, %v2117
  %v2318 = vmul.f32 %v2238, %v2118
  %v2319 = vmul.f32 %v2242, %v2119
  %v2320 = vmul.f32 %v2246, %v2120
  %v2321 = vmul.f32 %v2250, %v2121
  %v2322 = vmul.f32 %v2254, %v2122
  %v2323 = vmul.f32 %v2258, %v2123
  %v2324 = vmul.f32 %v2262, %v2124
  %v2325 = vmul.f32 %v2266, %v2125
  %v2326 = vmul.f32 %v2270, %v2126
  %v2327 = vmul.f32 %v2274, %v2127
  %v2328 = vmul.f32 %v2278, %v2128
  %v2329 = vmul.f32 %v2282, %v2129
  %v2330 = vmul.f32 %v2286, %v2130
  %v2331 = vmul.f32 %v2290, %v2131
  %vm2332 = vcmp.ge.f32.partialorder %v1808, %v2292
  %vm2333 = vcmp.ge.f32.partialorder %v1809, %v2293
  %vm2334 = vcmp.ge.f32.partialorder %v1810, %v2294
  %vm2335 = vcmp.ge.f32.partialorder %v1811, %v2295
  %vm2336 = vcmp.ge.f32.partialorder %v1812, %v2296
  %vm2337 = vcmp.ge.f32.partialorder %v1813, %v2297
  %vm2338 = vcmp.ge.f32.partialorder %v1814, %v2298
  %vm2339 = vcmp.ge.f32.partialorder %v1815, %v2299
  %vm2340 = vcmp.ge.f32.partialorder %v1816, %v2300
  %vm2341 = vcmp.ge.f32.partialorder %v1817, %v2301
  %vm2342 = vcmp.ge.f32.partialorder %v1818, %v2302
  %vm2343 = vcmp.ge.f32.partialorder %v1819, %v2303
  %vm2344 = vcmp.ge.f32.partialorder %v1820, %v2304
  %vm2345 = vcmp.ge.f32.partialorder %v1821, %v2305
  %vm2346 = vcmp.ge.f32.partialorder %v1822, %v2306
  %vm2347 = vcmp.ge.f32.partialorder %v1823, %v2307
  %vm2348 = vcmp.ge.f32.partialorder %v1824, %v2308
  %vm2349 = vcmp.ge.f32.partialorder %v1825, %v2309
  %vm2350 = vcmp.ge.f32.partialorder %v1826, %v2310
  %vm2351 = vcmp.ge.f32.partialorder %v1827, %v2311
  %vm2352 = vcmp.ge.f32.partialorder %v1828, %v2312
  %vm2353 = vcmp.ge.f32.partialorder %v1829, %v2313
  %vm2354 = vcmp.ge.f32.partialorder %v1830, %v2314
  %vm2355 = vcmp.ge.f32.partialorder %v1831, %v2315
  %vm2356 = vcmp.ge.f32.partialorder %v1832, %v2316
  %vm2357 = vcmp.ge.f32.partialorder %v1833, %v2317
  %vm2358 = vcmp.ge.f32.partialorder %v1834, %v2318
  %vm2359 = vcmp.ge.f32.partialorder %v1835, %v2319
  %vm2360 = vcmp.ge.f32.partialorder %v1836, %v2320
  %vm2361 = vcmp.ge.f32.partialorder %v1837, %v2321
  %vm2362 = vcmp.ge.f32.partialorder %v1838, %v2322
  %vm2363 = vcmp.ge.f32.partialorder %v1839, %v2323
  %vm2364 = vcmp.ge.f32.partialorder %v1840, %v2324
  %vm2365 = vcmp.ge.f32.partialorder %v1841, %v2325
  %vm2366 = vcmp.ge.f32.partialorder %v1842, %v2326
  %vm2367 = vcmp.ge.f32.partialorder %v1843, %v2327
  %vm2368 = vcmp.ge.f32.partialorder %v1844, %v2328
  %vm2369 = vcmp.ge.f32.partialorder %v1845, %v2329
  %vm2370 = vcmp.ge.f32.partialorder %v1846, %v2330
  %vm2371 = vcmp.ge.f32.partialorder %v1847, %v2331
  %vm2372 = vmand %vm985, %vm2332
  %vm2373 = vmand %vm986, %vm2333
  %vm2374 = vmand %vm987, %vm2334
  %vm2375 = vmand %vm988, %vm2335
  %vm2376 = vmand %vm989, %vm2336
  %vm2377 = vmand %vm990, %vm2337
  %vm2378 = vmand %vm991, %vm2338
  %vm2379 = vmand %vm992, %vm2339
  %vm2380 = vmand %vm993, %vm2340
  %vm2381 = vmand %vm994, %vm2341
  %vm2382 = vmand %vm995, %vm2342
  %vm2383 = vmand %vm996, %vm2343
  %vm2384 = vmand %vm997, %vm2344
  %vm2385 = vmand %vm998, %vm2345
  %vm2386 = vmand %vm999, %vm2346
  %vm2387 = vmand %vm1000, %vm2347
  %vm2388 = vmand %vm1001, %vm2348
  %vm2389 = vmand %vm1002, %vm2349
  %vm2390 = vmand %vm1003, %vm2350
  %vm2391 = vmand %vm1004, %vm2351
  %vm2392 = vmand %vm1005, %vm2352
  %vm2393 = vmand %vm1006, %vm2353
  %vm2394 = vmand %vm1007, %vm2354
  %vm2395 = vmand %vm1008, %vm2355
  %vm2396 = vmand %vm1009, %vm2356
  %vm2397 = vmand %vm1010, %vm2357
  %vm2398 = vmand %vm1011, %vm2358
  %vm2399 = vmand %vm1012, %vm2359
  %vm2400 = vmand %vm1013, %vm2360
  %vm2401 = vmand %vm1014, %vm2361
  %vm2402 = vmand %vm1015, %vm2362
  %vm2403 = vmand %vm1016, %vm2363
  %vm2404 = vmand %vm1017, %vm2364
  %vm2405 = vmand %vm1018, %vm2365
  %vm2406 = vmand %vm1019, %vm2366
  %vm2407 = vmand %vm1020, %vm2367
  %vm2408 = vmand %vm1021, %vm2368
  %vm2409 = vmand %vm1022, %vm2369
  %vm2410 = vmand %vm1023, %vm2370
  %vm2411 = vmand %vm1024, %vm2371
  %v2412 = vsel %vm2372, 1, 0
  %v2413 = vsel %vm2373, 1, 0
  %v2414 = vsel %vm2374, 1, 0
  %v2415 = vsel %vm2375, 1, 0
  %v2416 = vsel %vm2376, 1, 0
  %v2417 = vsel %vm2377, 1, 0
  %v2418 = vsel %vm2378, 1, 0
  %v2419 = vsel %vm2379, 1, 0
  %v2420 = vsel %vm2380, 1, 0
  %v2421 = vsel %vm2381, 1, 0
  %v2422 = vsel %vm2382, 1, 0
  %v2423 = vsel %vm2383, 1, 0
  %v2424 = vsel %vm2384, 1, 0
  %v2425 = vsel %vm2385, 1, 0
  %v2426 = vsel %vm2386, 1, 0
  %v2427 = vsel %vm2387, 1, 0
  %v2428 = vsel %vm2388, 1, 0
  %v2429 = vsel %vm2389, 1, 0
  %v2430 = vsel %vm2390, 1, 0
  %v2431 = vsel %vm2391, 1, 0
  %v2432 = vsel %vm2392, 1, 0
  %v2433 = vsel %vm2393, 1, 0
  %v2434 = vsel %vm2394, 1, 0
  %v2435 = vsel %vm2395, 1, 0
  %v2436 = vsel %vm2396, 1, 0
  %v2437 = vsel %vm2397, 1, 0
  %v2438 = vsel %vm2398, 1, 0
  %v2439 = vsel %vm2399, 1, 0
  %v2440 = vsel %vm2400, 1, 0
  %v2441 = vsel %vm2401, 1, 0
  %v2442 = vsel %vm2402, 1, 0
  %v2443 = vsel %vm2403, 1, 0
  %v2444 = vsel %vm2404, 1, 0
  %v2445 = vsel %vm2405, 1, 0
  %v2446 = vsel %vm2406, 1, 0
  %v2447 = vsel %vm2407, 1, 0
  %v2448 = vsel %vm2408, 1, 0
  %v2449 = vsel %vm2409, 1, 0
  %v2450 = vsel %vm2410, 1, 0
  %v2451 = vsel %vm2411, 1, 0
  %v2452 = vcvt.s32.f32 %v2412
  %v2453 = vcvt.s32.f32 %v2413
  %v2454 = vcvt.s32.f32 %v2414
  %v2455 = vcvt.s32.f32 %v2415
  %v2456 = vcvt.s32.f32 %v2416
  %v2457 = vcvt.s32.f32 %v2417
  %v2458 = vcvt.s32.f32 %v2418
  %v2459 = vcvt.s32.f32 %v2419
  %v2460 = vcvt.s32.f32 %v2420
  %v2461 = vcvt.s32.f32 %v2421
  %v2462 = vcvt.s32.f32 %v2422
  %v2463 = vcvt.s32.f32 %v2423
  %v2464 = vcvt.s32.f32 %v2424
  %v2465 = vcvt.s32.f32 %v2425
  %v2466 = vcvt.s32.f32 %v2426
  %v2467 = vcvt.s32.f32 %v2427
  %v2468 = vcvt.s32.f32 %v2428
  %v2469 = vcvt.s32.f32 %v2429
  %v2470 = vcvt.s32.f32 %v2430
  %v2471 = vcvt.s32.f32 %v2431
  %v2472 = vcvt.s32.f32 %v2432
  %v2473 = vcvt.s32.f32 %v2433
  %v2474 = vcvt.s32.f32 %v2434
  %v2475 = vcvt.s32.f32 %v2435
  %v2476 = vcvt.s32.f32 %v2436
  %v2477 = vcvt.s32.f32 %v2437
  %v2478 = vcvt.s32.f32 %v2438
  %v2479 = vcvt.s32.f32 %v2439
  %v2480 = vcvt.s32.f32 %v2440
  %v2481 = vcvt.s32.f32 %v2441
  %v2482 = vcvt.s32.f32 %v2442
  %v2483 = vcvt.s32.f32 %v2443
  %v2484 = vcvt.s32.f32 %v2444
  %v2485 = vcvt.s32.f32 %v2445
  %v2486 = vcvt.s32.f32 %v2446
  %v2487 = vcvt.s32.f32 %v2447
  %v2488 = vcvt.s32.f32 %v2448
  %v2489 = vcvt.s32.f32 %v2449
  %v2490 = vcvt.s32.f32 %v2450
  %v2491 = vcvt.s32.f32 %v2451
  %2492 = vmax.xlane.f32.xlu0 %v2452
  %v2493 = vpop.xlane.xlu0 %2492
  %2494 = vmax.xlane.f32.xlu0 %v2453
  %v2495 = vpop.xlane.xlu0 %2494
  %2496 = vmax.xlane.f32.xlu0 %v2454
  %v2497 = vpop.xlane.xlu0 %2496
  %2498 = vmax.xlane.f32.xlu0 %v2455
  %v2499 = vpop.xlane.xlu0 %2498
  %2500 = vmax.xlane.f32.xlu0 %v2456
  %v2501 = vpop.xlane.xlu0 %2500
  %2502 = vmax.xlane.f32.xlu0 %v2457
  %v2503 = vpop.xlane.xlu0 %2502
  %2504 = vmax.xlane.f32.xlu0 %v2458
  %v2505 = vpop.xlane.xlu0 %2504
  %2506 = vmax.xlane.f32.xlu0 %v2459
  %v2507 = vpop.xlane.xlu0 %2506
  %2508 = vmax.xlane.f32.xlu0 %v2460
  %v2509 = vpop.xlane.xlu0 %2508
  %2510 = vmax.xlane.f32.xlu0 %v2461
  %v2511 = vpop.xlane.xlu0 %2510
  %2512 = vmax.xlane.f32.xlu0 %v2462
  %v2513 = vpop.xlane.xlu0 %2512
  %2514 = vmax.xlane.f32.xlu0 %v2463
  %v2515 = vpop.xlane.xlu0 %2514
  %2516 = vmax.xlane.f32.xlu0 %v2464
  %v2517 = vpop.xlane.xlu0 %2516
  %2518 = vmax.xlane.f32.xlu0 %v2465
  %v2519 = vpop.xlane.xlu0 %2518
  %2520 = vmax.xlane.f32.xlu0 %v2466
  %v2521 = vpop.xlane.xlu0 %2520
  %2522 = vmax.xlane.f32.xlu0 %v2467
  %v2523 = vpop.xlane.xlu0 %2522
  %2524 = vmax.xlane.f32.xlu0 %v2468
  %v2525 = vpop.xlane.xlu0 %2524
  %2526 = vmax.xlane.f32.xlu0 %v2469
  %v2527 = vpop.xlane.xlu0 %2526
  %2528 = vmax.xlane.f32.xlu0 %v2470
  %v2529 = vpop.xlane.xlu0 %2528
  %2530 = vmax.xlane.f32.xlu0 %v2471
  %v2531 = vpop.xlane.xlu0 %2530
  %2532 = vmax.xlane.f32.xlu0 %v2472
  %v2533 = vpop.xlane.xlu0 %2532
  %2534 = vmax.xlane.f32.xlu0 %v2473
  %v2535 = vpop.xlane.xlu0 %2534
  %2536 = vmax.xlane.f32.xlu0 %v2474
  %v2537 = vpop.xlane.xlu0 %2536
  %2538 = vmax.xlane.f32.xlu0 %v2475
  %v2539 = vpop.xlane.xlu0 %2538
  %2540 = vmax.xlane.f32.xlu0 %v2476
  %v2541 = vpop.xlane.xlu0 %2540
  %2542 = vmax.xlane.f32.xlu0 %v2477
  %v2543 = vpop.xlane.xlu0 %2542
  %2544 = vmax.xlane.f32.xlu0 %v2478
  %v2545 = vpop.xlane.xlu0 %2544
  %2546 = vmax.xlane.f32.xlu0 %v2479
  %v2547 = vpop.xlane.xlu0 %2546
  %2548 = vmax.xlane.f32.xlu0 %v2480
  %v2549 = vpop.xlane.xlu0 %2548
  %2550 = vmax.xlane.f32.xlu0 %v2481
  %v2551 = vpop.xlane.xlu0 %2550
  %2552 = vmax.xlane.f32.xlu0 %v2482
  %v2553 = vpop.xlane.xlu0 %2552
  %2554 = vmax.xlane.f32.xlu0 %v2483
  %v2555 = vpop.xlane.xlu0 %2554
  %2556 = vmax.xlane.f32.xlu0 %v2484
  %v2557 = vpop.xlane.xlu0 %2556
  %2558 = vmax.xlane.f32.xlu0 %v2485
  %v2559 = vpop.xlane.xlu0 %2558
  %2560 = vmax.xlane.f32.xlu0 %v2486
  %v2561 = vpop.xlane.xlu0 %2560
  %2562 = vmax.xlane.f32.xlu0 %v2487
  %v2563 = vpop.xlane.xlu0 %2562
  %2564 = vmax.xlane.f32.xlu0 %v2488
  %v2565 = vpop.xlane.xlu0 %2564
  %2566 = vmax.xlane.f32.xlu0 %v2489
  %v2567 = vpop.xlane.xlu0 %2566
  %2568 = vmax.xlane.f32.xlu0 %v2490
  %v2569 = vpop.xlane.xlu0 %2568
  %2570 = vmax.xlane.f32.xlu0 %v2491
  %v2571 = vpop.xlane.xlu0 %2570
  %vm2572 = vcmp.gt.f32.partialorder %v2493, 0.5
  %vm2573 = vcmp.gt.f32.partialorder %v2495, 0.5
  %vm2574 = vcmp.gt.f32.partialorder %v2497, 0.5
  %vm2575 = vcmp.gt.f32.partialorder %v2499, 0.5
  %vm2576 = vcmp.gt.f32.partialorder %v2501, 0.5
  %vm2577 = vcmp.gt.f32.partialorder %v2503, 0.5
  %vm2578 = vcmp.gt.f32.partialorder %v2505, 0.5
  %vm2579 = vcmp.gt.f32.partialorder %v2507, 0.5
  %vm2580 = vcmp.gt.f32.partialorder %v2509, 0.5
  %vm2581 = vcmp.gt.f32.partialorder %v2511, 0.5
  %vm2582 = vcmp.gt.f32.partialorder %v2513, 0.5
  %vm2583 = vcmp.gt.f32.partialorder %v2515, 0.5
  %vm2584 = vcmp.gt.f32.partialorder %v2517, 0.5
  %vm2585 = vcmp.gt.f32.partialorder %v2519, 0.5
  %vm2586 = vcmp.gt.f32.partialorder %v2521, 0.5
  %vm2587 = vcmp.gt.f32.partialorder %v2523, 0.5
  %vm2588 = vcmp.gt.f32.partialorder %v2525, 0.5
  %vm2589 = vcmp.gt.f32.partialorder %v2527, 0.5
  %vm2590 = vcmp.gt.f32.partialorder %v2529, 0.5
  %vm2591 = vcmp.gt.f32.partialorder %v2531, 0.5
  %vm2592 = vcmp.gt.f32.partialorder %v2533, 0.5
  %vm2593 = vcmp.gt.f32.partialorder %v2535, 0.5
  %vm2594 = vcmp.gt.f32.partialorder %v2537, 0.5
  %vm2595 = vcmp.gt.f32.partialorder %v2539, 0.5
  %vm2596 = vcmp.gt.f32.partialorder %v2541, 0.5
  %vm2597 = vcmp.gt.f32.partialorder %v2543, 0.5
  %vm2598 = vcmp.gt.f32.partialorder %v2545, 0.5
  %vm2599 = vcmp.gt.f32.partialorder %v2547, 0.5
  %vm2600 = vcmp.gt.f32.partialorder %v2549, 0.5
  %vm2601 = vcmp.gt.f32.partialorder %v2551, 0.5
  %vm2602 = vcmp.gt.f32.partialorder %v2553, 0.5
  %vm2603 = vcmp.gt.f32.partialorder %v2555, 0.5
  %vm2604 = vcmp.gt.f32.partialorder %v2557, 0.5
  %vm2605 = vcmp.gt.f32.partialorder %v2559, 0.5
  %vm2606 = vcmp.gt.f32.partialorder %v2561, 0.5
  %vm2607 = vcmp.gt.f32.partialorder %v2563, 0.5
  %vm2608 = vcmp.gt.f32.partialorder %v2565, 0.5
  %vm2609 = vcmp.gt.f32.partialorder %v2567, 0.5
  %vm2610 = vcmp.gt.f32.partialorder %v2569, 0.5
  %vm2611 = vcmp.gt.f32.partialorder %v2571, 0.5
  %v2612 = vsel %vm2572, %v12, 1e+09
  %v2613 = vsel %vm2573, %v13, 1e+09
  %v2614 = vsel %vm2574, %v14, 1e+09
  %v2615 = vsel %vm2575, %v15, 1e+09
  %v2616 = vsel %vm2576, %v16, 1e+09
  %v2617 = vsel %vm2577, %v17, 1e+09
  %v2618 = vsel %vm2578, %v18, 1e+09
  %v2619 = vsel %vm2579, %v19, 1e+09
  %v2620 = vsel %vm2580, %v20, 1e+09
  %v2621 = vsel %vm2581, %v21, 1e+09
  %v2622 = vsel %vm2582, %v22, 1e+09
  %v2623 = vsel %vm2583, %v23, 1e+09
  %v2624 = vsel %vm2584, %v24, 1e+09
  %v2625 = vsel %vm2585, %v25, 1e+09
  %v2626 = vsel %vm2586, %v26, 1e+09
  %v2627 = vsel %vm2587, %v27, 1e+09
  %v2628 = vsel %vm2588, %v28, 1e+09
  %v2629 = vsel %vm2589, %v29, 1e+09
  %v2630 = vsel %vm2590, %v30, 1e+09
  %v2631 = vsel %vm2591, %v31, 1e+09
  %v2632 = vsel %vm2592, %v32, 1e+09
  %v2633 = vsel %vm2593, %v33, 1e+09
  %v2634 = vsel %vm2594, %v34, 1e+09
  %v2635 = vsel %vm2595, %v35, 1e+09
  %v2636 = vsel %vm2596, %v36, 1e+09
  %v2637 = vsel %vm2597, %v37, 1e+09
  %v2638 = vsel %vm2598, %v38, 1e+09
  %v2639 = vsel %vm2599, %v39, 1e+09
  %v2640 = vsel %vm2600, %v40, 1e+09
  %v2641 = vsel %vm2601, %v41, 1e+09
  %v2642 = vsel %vm2602, %v42, 1e+09
  %v2643 = vsel %vm2603, %v43, 1e+09
  %v2644 = vsel %vm2604, %v44, 1e+09
  %v2645 = vsel %vm2605, %v45, 1e+09
  %v2646 = vsel %vm2606, %v46, 1e+09
  %v2647 = vsel %vm2607, %v47, 1e+09
  %v2648 = vsel %vm2608, %v48, 1e+09
  %v2649 = vsel %vm2609, %v49, 1e+09
  %v2650 = vsel %vm2610, %v50, 1e+09
  %v2651 = vsel %vm2611, %v51, 1e+09
  %vm2652 = vcmask 64568
  %v2653 = vsel %vm2652, %v2612, inf
  %v2654 = vsel %vm2652, %v2613, inf
  %v2655 = vsel %vm2652, %v2614, inf
  %v2656 = vsel %vm2652, %v2615, inf
  %v2657 = vsel %vm2652, %v2616, inf
  %v2658 = vmin.f32 %v2653, %v2657
  %v2659 = vsel %vm2652, %v2617, inf
  %v2660 = vmin.f32 %v2654, %v2659
  %v2661 = vsel %vm2652, %v2618, inf
  %v2662 = vmin.f32 %v2655, %v2661
  %v2663 = vsel %vm2652, %v2619, inf
  %v2664 = vmin.f32 %v2656, %v2663
  %v2665 = vsel %vm2652, %v2620, inf
  %v2666 = vmin.f32 %v2658, %v2665
  %v2667 = vsel %vm2652, %v2621, inf
  %v2668 = vmin.f32 %v2660, %v2667
  %v2669 = vsel %vm2652, %v2622, inf
  %v2670 = vmin.f32 %v2662, %v2669
  %v2671 = vsel %vm2652, %v2623, inf
  %v2672 = vmin.f32 %v2664, %v2671
  %v2673 = vsel %vm2652, %v2624, inf
  %v2674 = vmin.f32 %v2666, %v2673
  %v2675 = vsel %vm2652, %v2625, inf
  %v2676 = vmin.f32 %v2668, %v2675
  %v2677 = vsel %vm2652, %v2626, inf
  %v2678 = vmin.f32 %v2670, %v2677
  %v2679 = vsel %vm2652, %v2627, inf
  %v2680 = vmin.f32 %v2672, %v2679
  %v2681 = vsel %vm2652, %v2628, inf
  %v2682 = vmin.f32 %v2674, %v2681
  %v2683 = vsel %vm2652, %v2629, inf
  %v2684 = vmin.f32 %v2676, %v2683
  %v2685 = vsel %vm2652, %v2630, inf
  %v2686 = vmin.f32 %v2678, %v2685
  %v2687 = vsel %vm2652, %v2631, inf
  %v2688 = vmin.f32 %v2680, %v2687
  %v2689 = vsel %vm2652, %v2632, inf
  %v2690 = vmin.f32 %v2682, %v2689
  %v2691 = vsel %vm2652, %v2633, inf
  %v2692 = vmin.f32 %v2684, %v2691
  %v2693 = vsel %vm2652, %v2634, inf
  %v2694 = vmin.f32 %v2686, %v2693
  %v2695 = vsel %vm2652, %v2635, inf
  %v2696 = vmin.f32 %v2688, %v2695
  %v2697 = vsel %vm2652, %v2636, inf
  %v2698 = vmin.f32 %v2690, %v2697
  %v2699 = vsel %vm2652, %v2637, inf
  %v2700 = vmin.f32 %v2692, %v2699
  %v2701 = vsel %vm2652, %v2638, inf
  %v2702 = vmin.f32 %v2694, %v2701
  %v2703 = vsel %vm2652, %v2639, inf
  %v2704 = vmin.f32 %v2696, %v2703
  %v2705 = vsel %vm2652, %v2640, inf
  %v2706 = vmin.f32 %v2698, %v2705
  %v2707 = vsel %vm2652, %v2641, inf
  %v2708 = vmin.f32 %v2700, %v2707
  %v2709 = vsel %vm2652, %v2642, inf
  %v2710 = vmin.f32 %v2702, %v2709
  %v2711 = vsel %vm2652, %v2643, inf
  %v2712 = vmin.f32 %v2704, %v2711
  %v2713 = vsel %vm2652, %v2644, inf
  %v2714 = vmin.f32 %v2706, %v2713
  %v2715 = vsel %vm2652, %v2645, inf
  %v2716 = vmin.f32 %v2708, %v2715
  %v2717 = vsel %vm2652, %v2646, inf
  %v2718 = vmin.f32 %v2710, %v2717
  %v2719 = vsel %vm2652, %v2647, inf
  %v2720 = vmin.f32 %v2712, %v2719
  %v2721 = vsel %vm2652, %v2648, inf
  %v2722 = vmin.f32 %v2714, %v2721
  %v2723 = vsel %vm2652, %v2649, inf
  %v2724 = vmin.f32 %v2716, %v2723
  %v2725 = vsel %vm2652, %v2650, inf
  %v2726 = vmin.f32 %v2718, %v2725
  %v2727 = vsel %vm2652, %v2651, inf
  %v2728 = vmin.f32 %v2720, %v2727
  %v2729 = vmin.f32 %v2722, %v2724
  %v2730 = vmin.f32 %v2726, %v2728
  %v2731 = vmin.f32 %v2729, %v2730
  %2732 = vmin.xlane.f32.xlu0 %v2731
  %v2733 = vpop.xlane.xlu0 %2732
  %v2734 = vrot.slane %v2733, 4
  %v2735 = vmin.f32 %v2733, %v2734
  %v2736 = vrot.slane %v2735, 2
  %v2737 = vmin.f32 %v2735, %v2736
  %v2738 = vrot.slane %v2737, 1
  %v2739 = vmin.f32 %v2737, %v2738
  %s2740 = vtos %v2739
  %v2741 = vstv %s2740
  %vm2742 = vcmp.eq.f32.partialorder %v12, %v2741
  %vm2743 = vcmp.eq.f32.partialorder %v13, %v2741
  %vm2744 = vcmp.eq.f32.partialorder %v14, %v2741
  %vm2745 = vcmp.eq.f32.partialorder %v15, %v2741
  %vm2746 = vcmp.eq.f32.partialorder %v16, %v2741
  %vm2747 = vcmp.eq.f32.partialorder %v17, %v2741
  %vm2748 = vcmp.eq.f32.partialorder %v18, %v2741
  %vm2749 = vcmp.eq.f32.partialorder %v19, %v2741
  %vm2750 = vcmp.eq.f32.partialorder %v20, %v2741
  %vm2751 = vcmp.eq.f32.partialorder %v21, %v2741
  %vm2752 = vcmp.eq.f32.partialorder %v22, %v2741
  %vm2753 = vcmp.eq.f32.partialorder %v23, %v2741
  %vm2754 = vcmp.eq.f32.partialorder %v24, %v2741
  %vm2755 = vcmp.eq.f32.partialorder %v25, %v2741
  %vm2756 = vcmp.eq.f32.partialorder %v26, %v2741
  %vm2757 = vcmp.eq.f32.partialorder %v27, %v2741
  %vm2758 = vcmp.eq.f32.partialorder %v28, %v2741
  %vm2759 = vcmp.eq.f32.partialorder %v29, %v2741
  %vm2760 = vcmp.eq.f32.partialorder %v30, %v2741
  %vm2761 = vcmp.eq.f32.partialorder %v31, %v2741
  %vm2762 = vcmp.eq.f32.partialorder %v32, %v2741
  %vm2763 = vcmp.eq.f32.partialorder %v33, %v2741
  %vm2764 = vcmp.eq.f32.partialorder %v34, %v2741
  %vm2765 = vcmp.eq.f32.partialorder %v35, %v2741
  %vm2766 = vcmp.eq.f32.partialorder %v36, %v2741
  %vm2767 = vcmp.eq.f32.partialorder %v37, %v2741
  %vm2768 = vcmp.eq.f32.partialorder %v38, %v2741
  %vm2769 = vcmp.eq.f32.partialorder %v39, %v2741
  %vm2770 = vcmp.eq.f32.partialorder %v40, %v2741
  %vm2771 = vcmp.eq.f32.partialorder %v41, %v2741
  %vm2772 = vcmp.eq.f32.partialorder %v42, %v2741
  %vm2773 = vcmp.eq.f32.partialorder %v43, %v2741
  %vm2774 = vcmp.eq.f32.partialorder %v44, %v2741
  %vm2775 = vcmp.eq.f32.partialorder %v45, %v2741
  %vm2776 = vcmp.eq.f32.partialorder %v46, %v2741
  %vm2777 = vcmp.eq.f32.partialorder %v47, %v2741
  %vm2778 = vcmp.eq.f32.partialorder %v48, %v2741
  %vm2779 = vcmp.eq.f32.partialorder %v49, %v2741
  %vm2780 = vcmp.eq.f32.partialorder %v50, %v2741
  %vm2781 = vcmp.eq.f32.partialorder %v51, %v2741
  %vm2782 = vmand %vm2742, %vm2572
  %vm2783 = vmand %vm2743, %vm2573
  %vm2784 = vmand %vm2744, %vm2574
  %vm2785 = vmand %vm2745, %vm2575
  %vm2786 = vmand %vm2746, %vm2576
  %vm2787 = vmand %vm2747, %vm2577
  %vm2788 = vmand %vm2748, %vm2578
  %vm2789 = vmand %vm2749, %vm2579
  %vm2790 = vmand %vm2750, %vm2580
  %vm2791 = vmand %vm2751, %vm2581
  %vm2792 = vmand %vm2752, %vm2582
  %vm2793 = vmand %vm2753, %vm2583
  %vm2794 = vmand %vm2754, %vm2584
  %vm2795 = vmand %vm2755, %vm2585
  %vm2796 = vmand %vm2756, %vm2586
  %vm2797 = vmand %vm2757, %vm2587
  %vm2798 = vmand %vm2758, %vm2588
  %vm2799 = vmand %vm2759, %vm2589
  %vm2800 = vmand %vm2760, %vm2590
  %vm2801 = vmand %vm2761, %vm2591
  %vm2802 = vmand %vm2762, %vm2592
  %vm2803 = vmand %vm2763, %vm2593
  %vm2804 = vmand %vm2764, %vm2594
  %vm2805 = vmand %vm2765, %vm2595
  %vm2806 = vmand %vm2766, %vm2596
  %vm2807 = vmand %vm2767, %vm2597
  %vm2808 = vmand %vm2768, %vm2598
  %vm2809 = vmand %vm2769, %vm2599
  %vm2810 = vmand %vm2770, %vm2600
  %vm2811 = vmand %vm2771, %vm2601
  %vm2812 = vmand %vm2772, %vm2602
  %vm2813 = vmand %vm2773, %vm2603
  %vm2814 = vmand %vm2774, %vm2604
  %vm2815 = vmand %vm2775, %vm2605
  %vm2816 = vmand %vm2776, %vm2606
  %vm2817 = vmand %vm2777, %vm2607
  %vm2818 = vmand %vm2778, %vm2608
  %vm2819 = vmand %vm2779, %vm2609
  %vm2820 = vmand %vm2780, %vm2610
  %vm2821 = vmand %vm2781, %vm2611
  %v2822 = vsel %vm2782, 1.0, 0.0
  %v2823 = vsel %vm2783, 1.0, 0.0
  %v2824 = vsel %vm2784, 1.0, 0.0
  %v2825 = vsel %vm2785, 1.0, 0.0
  %v2826 = vsel %vm2786, 1.0, 0.0
  %v2827 = vsel %vm2787, 1.0, 0.0
  %v2828 = vsel %vm2788, 1.0, 0.0
  %v2829 = vsel %vm2789, 1.0, 0.0
  %v2830 = vsel %vm2790, 1.0, 0.0
  %v2831 = vsel %vm2791, 1.0, 0.0
  %v2832 = vsel %vm2792, 1.0, 0.0
  %v2833 = vsel %vm2793, 1.0, 0.0
  %v2834 = vsel %vm2794, 1.0, 0.0
  %v2835 = vsel %vm2795, 1.0, 0.0
  %v2836 = vsel %vm2796, 1.0, 0.0
  %v2837 = vsel %vm2797, 1.0, 0.0
  %v2838 = vsel %vm2798, 1.0, 0.0
  %v2839 = vsel %vm2799, 1.0, 0.0
  %v2840 = vsel %vm2800, 1.0, 0.0
  %v2841 = vsel %vm2801, 1.0, 0.0
  %v2842 = vsel %vm2802, 1.0, 0.0
  %v2843 = vsel %vm2803, 1.0, 0.0
  %v2844 = vsel %vm2804, 1.0, 0.0
  %v2845 = vsel %vm2805, 1.0, 0.0
  %v2846 = vsel %vm2806, 1.0, 0.0
  %v2847 = vsel %vm2807, 1.0, 0.0
  %v2848 = vsel %vm2808, 1.0, 0.0
  %v2849 = vsel %vm2809, 1.0, 0.0
  %v2850 = vsel %vm2810, 1.0, 0.0
  %v2851 = vsel %vm2811, 1.0, 0.0
  %v2852 = vsel %vm2812, 1.0, 0.0
  %v2853 = vsel %vm2813, 1.0, 0.0
  %v2854 = vsel %vm2814, 1.0, 0.0
  %v2855 = vsel %vm2815, 1.0, 0.0
  %v2856 = vsel %vm2816, 1.0, 0.0
  %v2857 = vsel %vm2817, 1.0, 0.0
  %v2858 = vsel %vm2818, 1.0, 0.0
  %v2859 = vsel %vm2819, 1.0, 0.0
  %v2860 = vsel %vm2820, 1.0, 0.0
  %v2861 = vsel %vm2821, 1.0, 0.0
  %2863 = vset.pattern.permute.xlu0 7
  %2864 = vperm.xlu0 %2863, %v2822
  %v2865 = vpop.permute.xlu0 %2864
  %2868 = vset.pattern.permute.xlu0 7
  %2869 = vperm.xlu0 %2868, %v2823
  %v2870 = vpop.permute.xlu0 %2869
  %2873 = vset.pattern.permute.xlu0 7
  %2874 = vperm.xlu0 %2873, %v2824
  %v2875 = vpop.permute.xlu0 %2874
  %2878 = vset.pattern.permute.xlu0 7
  %2879 = vperm.xlu0 %2878, %v2825
  %v2880 = vpop.permute.xlu0 %2879
  %2883 = vset.pattern.permute.xlu0 7
  %2884 = vperm.xlu0 %2883, %v2826
  %v2885 = vpop.permute.xlu0 %2884
  %2888 = vset.pattern.permute.xlu0 7
  %2889 = vperm.xlu0 %2888, %v2827
  %v2890 = vpop.permute.xlu0 %2889
  %2893 = vset.pattern.permute.xlu0 7
  %2894 = vperm.xlu0 %2893, %v2828
  %v2895 = vpop.permute.xlu0 %2894
  %2898 = vset.pattern.permute.xlu0 7
  %2899 = vperm.xlu0 %2898, %v2829
  %v2900 = vpop.permute.xlu0 %2899
  %2903 = vset.pattern.permute.xlu0 7
  %2904 = vperm.xlu0 %2903, %v2830
  %v2905 = vpop.permute.xlu0 %2904
  %2908 = vset.pattern.permute.xlu0 7
  %2909 = vperm.xlu0 %2908, %v2831
  %v2910 = vpop.permute.xlu0 %2909
  %2913 = vset.pattern.permute.xlu0 7
  %2914 = vperm.xlu0 %2913, %v2832
  %v2915 = vpop.permute.xlu0 %2914
  %2918 = vset.pattern.permute.xlu0 7
  %2919 = vperm.xlu0 %2918, %v2833
  %v2920 = vpop.permute.xlu0 %2919
  %2923 = vset.pattern.permute.xlu0 7
  %2924 = vperm.xlu0 %2923, %v2834
  %v2925 = vpop.permute.xlu0 %2924
  %2928 = vset.pattern.permute.xlu0 7
  %2929 = vperm.xlu0 %2928, %v2835
  %v2930 = vpop.permute.xlu0 %2929
  %2933 = vset.pattern.permute.xlu0 7
  %2934 = vperm.xlu0 %2933, %v2836
  %v2935 = vpop.permute.xlu0 %2934
  %2938 = vset.pattern.permute.xlu0 7
  %2939 = vperm.xlu0 %2938, %v2837
  %v2940 = vpop.permute.xlu0 %2939
  %2943 = vset.pattern.permute.xlu0 7
  %2944 = vperm.xlu0 %2943, %v2838
  %v2945 = vpop.permute.xlu0 %2944
  %2948 = vset.pattern.permute.xlu0 7
  %2949 = vperm.xlu0 %2948, %v2839
  %v2950 = vpop.permute.xlu0 %2949
  %2953 = vset.pattern.permute.xlu0 7
  %2954 = vperm.xlu0 %2953, %v2840
  %v2955 = vpop.permute.xlu0 %2954
  %2958 = vset.pattern.permute.xlu0 7
  %2959 = vperm.xlu0 %2958, %v2841
  %v2960 = vpop.permute.xlu0 %2959
  %2963 = vset.pattern.permute.xlu0 7
  %2964 = vperm.xlu0 %2963, %v2842
  %v2965 = vpop.permute.xlu0 %2964
  %2968 = vset.pattern.permute.xlu0 7
  %2969 = vperm.xlu0 %2968, %v2843
  %v2970 = vpop.permute.xlu0 %2969
  %2973 = vset.pattern.permute.xlu0 7
  %2974 = vperm.xlu0 %2973, %v2844
  %v2975 = vpop.permute.xlu0 %2974
  %2978 = vset.pattern.permute.xlu0 7
  %2979 = vperm.xlu0 %2978, %v2845
  %v2980 = vpop.permute.xlu0 %2979
  %2983 = vset.pattern.permute.xlu0 7
  %2984 = vperm.xlu0 %2983, %v2846
  %v2985 = vpop.permute.xlu0 %2984
  %2988 = vset.pattern.permute.xlu0 7
  %2989 = vperm.xlu0 %2988, %v2847
  %v2990 = vpop.permute.xlu0 %2989
  %2993 = vset.pattern.permute.xlu0 7
  %2994 = vperm.xlu0 %2993, %v2848
  %v2995 = vpop.permute.xlu0 %2994
  %2998 = vset.pattern.permute.xlu0 7
  %2999 = vperm.xlu0 %2998, %v2849
  %v3000 = vpop.permute.xlu0 %2999
  %3003 = vset.pattern.permute.xlu0 7
  %3004 = vperm.xlu0 %3003, %v2850
  %v3005 = vpop.permute.xlu0 %3004
  %3008 = vset.pattern.permute.xlu0 7
  %3009 = vperm.xlu0 %3008, %v2851
  %v3010 = vpop.permute.xlu0 %3009
  %3013 = vset.pattern.permute.xlu0 7
  %3014 = vperm.xlu0 %3013, %v2852
  %v3015 = vpop.permute.xlu0 %3014
  %3018 = vset.pattern.permute.xlu0 7
  %3019 = vperm.xlu0 %3018, %v2853
  %v3020 = vpop.permute.xlu0 %3019
  %3023 = vset.pattern.permute.xlu0 7
  %3024 = vperm.xlu0 %3023, %v2854
  %v3025 = vpop.permute.xlu0 %3024
  %3028 = vset.pattern.permute.xlu0 7
  %3029 = vperm.xlu0 %3028, %v2855
  %v3030 = vpop.permute.xlu0 %3029
  %3033 = vset.pattern.permute.xlu0 7
  %3034 = vperm.xlu0 %3033, %v2856
  %v3035 = vpop.permute.xlu0 %3034
  %3038 = vset.pattern.permute.xlu0 7
  %3039 = vperm.xlu0 %3038, %v2857
  %v3040 = vpop.permute.xlu0 %3039
  %3043 = vset.pattern.permute.xlu0 7
  %3044 = vperm.xlu0 %3043, %v2858
  %v3045 = vpop.permute.xlu0 %3044
  %3048 = vset.pattern.permute.xlu0 7
  %3049 = vperm.xlu0 %3048, %v2859
  %v3050 = vpop.permute.xlu0 %3049
  %3053 = vset.pattern.permute.xlu0 7
  %3054 = vperm.xlu0 %3053, %v2860
  %v3055 = vpop.permute.xlu0 %3054
  %3058 = vset.pattern.permute.xlu0 7
  %3059 = vperm.xlu0 %3058, %v2861
  %v3060 = vpop.permute.xlu0 %3059
  %v3062 = vmul.f32 %v12, %v2865
  %v3063 = vmul.f32 %v13, %v2870
  %v3064 = vmul.f32 %v14, %v2875
  %v3065 = vmul.f32 %v15, %v2880
  %v3066 = vmul.f32 %v16, %v2885
  %v3067 = vmul.f32 %v17, %v2890
  %v3068 = vmul.f32 %v18, %v2895
  %v3069 = vmul.f32 %v19, %v2900
  %v3070 = vmul.f32 %v20, %v2905
  %v3071 = vmul.f32 %v21, %v2910
  %v3072 = vmul.f32 %v22, %v2915
  %v3073 = vmul.f32 %v23, %v2920
  %v3074 = vmul.f32 %v24, %v2925
  %v3075 = vmul.f32 %v25, %v2930
  %v3076 = vmul.f32 %v26, %v2935
  %v3077 = vmul.f32 %v27, %v2940
  %v3078 = vmul.f32 %v28, %v2945
  %v3079 = vmul.f32 %v29, %v2950
  %v3080 = vmul.f32 %v30, %v2955
  %v3081 = vmul.f32 %v31, %v2960
  %v3082 = vmul.f32 %v32, %v2965
  %v3083 = vmul.f32 %v33, %v2970
  %v3084 = vmul.f32 %v34, %v2975
  %v3085 = vmul.f32 %v35, %v2980
  %v3086 = vmul.f32 %v36, %v2985
  %v3087 = vmul.f32 %v37, %v2990
  %v3088 = vmul.f32 %v38, %v2995
  %v3089 = vmul.f32 %v39, %v3000
  %v3090 = vmul.f32 %v40, %v3005
  %v3091 = vmul.f32 %v41, %v3010
  %v3092 = vmul.f32 %v42, %v3015
  %v3093 = vmul.f32 %v43, %v3020
  %v3094 = vmul.f32 %v44, %v3025
  %v3095 = vmul.f32 %v45, %v3030
  %v3096 = vmul.f32 %v46, %v3035
  %v3097 = vmul.f32 %v47, %v3040
  %v3098 = vmul.f32 %v48, %v3045
  %v3099 = vmul.f32 %v49, %v3050
  %v3100 = vmul.f32 %v50, %v3055
  %v3101 = vmul.f32 %v51, %v3060
  %vm3102 = vcmask 64512
  %v3103 = vsel %vm3102, %v3062, 0.0
  %v3104 = vsel %vm3102, %v3063, 0.0
  %v3105 = vadd.f32 %v3103, %v3104
  %v3106 = vsel %vm3102, %v3064, 0.0
  %v3107 = vadd.f32 %v3105, %v3106
  %v3108 = vsel %vm3102, %v3065, 0.0
  %v3109 = vadd.f32 %v3107, %v3108
  %v3110 = vsel %vm3102, %v3066, 0.0
  %v3111 = vadd.f32 %v3109, %v3110
  %v3112 = vsel %vm3102, %v3067, 0.0
  %v3113 = vadd.f32 %v3111, %v3112
  %v3114 = vsel %vm3102, %v3068, 0.0
  %v3115 = vadd.f32 %v3113, %v3114
  %v3116 = vsel %vm3102, %v3069, 0.0
  %v3117 = vadd.f32 %v3115, %v3116
  %v3118 = vsel %vm3102, %v3070, 0.0
  %v3119 = vadd.f32 %v3117, %v3118
  %v3120 = vsel %vm3102, %v3071, 0.0
  %v3121 = vadd.f32 %v3119, %v3120
  %v3122 = vsel %vm3102, %v3072, 0.0
  %v3123 = vadd.f32 %v3121, %v3122
  %v3124 = vsel %vm3102, %v3073, 0.0
  %v3125 = vadd.f32 %v3123, %v3124
  %v3126 = vsel %vm3102, %v3074, 0.0
  %v3127 = vadd.f32 %v3125, %v3126
  %v3128 = vsel %vm3102, %v3075, 0.0
  %v3129 = vadd.f32 %v3127, %v3128
  %v3130 = vsel %vm3102, %v3076, 0.0
  %v3131 = vadd.f32 %v3129, %v3130
  %v3132 = vsel %vm3102, %v3077, 0.0
  %v3133 = vadd.f32 %v3131, %v3132
  %v3134 = vsel %vm3102, %v3078, 0.0
  %v3135 = vadd.f32 %v3133, %v3134
  %v3136 = vsel %vm3102, %v3079, 0.0
  %v3137 = vadd.f32 %v3135, %v3136
  %v3138 = vsel %vm3102, %v3080, 0.0
  %v3139 = vadd.f32 %v3137, %v3138
  %v3140 = vsel %vm3102, %v3081, 0.0
  %v3141 = vadd.f32 %v3139, %v3140
  %v3142 = vsel %vm3102, %v3082, 0.0
  %v3143 = vadd.f32 %v3141, %v3142
  %v3144 = vsel %vm3102, %v3083, 0.0
  %v3145 = vadd.f32 %v3143, %v3144
  %v3146 = vsel %vm3102, %v3084, 0.0
  %v3147 = vadd.f32 %v3145, %v3146
  %v3148 = vsel %vm3102, %v3085, 0.0
  %v3149 = vadd.f32 %v3147, %v3148
  %v3150 = vsel %vm3102, %v3086, 0.0
  %v3151 = vadd.f32 %v3149, %v3150
  %v3152 = vsel %vm3102, %v3087, 0.0
  %v3153 = vadd.f32 %v3151, %v3152
  %v3154 = vsel %vm3102, %v3088, 0.0
  %v3155 = vadd.f32 %v3153, %v3154
  %v3156 = vsel %vm3102, %v3089, 0.0
  %v3157 = vadd.f32 %v3155, %v3156
  %v3158 = vsel %vm3102, %v3090, 0.0
  %v3159 = vadd.f32 %v3157, %v3158
  %v3160 = vsel %vm3102, %v3091, 0.0
  %v3161 = vadd.f32 %v3159, %v3160
  %v3162 = vsel %vm3102, %v3092, 0.0
  %v3163 = vadd.f32 %v3161, %v3162
  %v3164 = vsel %vm3102, %v3093, 0.0
  %v3165 = vadd.f32 %v3163, %v3164
  %v3166 = vsel %vm3102, %v3094, 0.0
  %v3167 = vadd.f32 %v3165, %v3166
  %v3168 = vsel %vm3102, %v3095, 0.0
  %v3169 = vadd.f32 %v3167, %v3168
  %v3170 = vsel %vm3102, %v3096, 0.0
  %v3171 = vadd.f32 %v3169, %v3170
  %v3172 = vsel %vm3102, %v3097, 0.0
  %v3173 = vadd.f32 %v3171, %v3172
  %v3174 = vsel %vm3102, %v3098, 0.0
  %v3175 = vadd.f32 %v3173, %v3174
  %v3176 = vsel %vm3102, %v3099, 0.0
  %v3177 = vadd.f32 %v3175, %v3176
  %v3178 = vsel %vm3102, %v3100, 0.0
  %v3179 = vadd.f32 %v3177, %v3178
  %v3180 = vsel %vm3102, %v3101, 0.0
  %v3181 = vadd.f32 %v3179, %v3180
  %v3182 = vrot.slane %v3181, 4
  %v3183 = vadd.f32 %v3181, %v3182
  %v3184 = vrot.slane %v3183, 2
  %v3185 = vadd.f32 %v3183, %v3184
  %v3186 = vrot.slane %v3185, 1
  %v3187 = vadd.f32 %v3185, %v3186
  %v3188 = vmul.f32 %v1065, %v2865
  %v3189 = vmul.f32 %v1066, %v2870
  %v3190 = vmul.f32 %v1067, %v2875
  %v3191 = vmul.f32 %v1068, %v2880
  %v3192 = vmul.f32 %v1069, %v2885
  %v3193 = vmul.f32 %v1070, %v2890
  %v3194 = vmul.f32 %v1071, %v2895
  %v3195 = vmul.f32 %v1072, %v2900
  %v3196 = vmul.f32 %v1073, %v2905
  %v3197 = vmul.f32 %v1074, %v2910
  %v3198 = vmul.f32 %v1075, %v2915
  %v3199 = vmul.f32 %v1076, %v2920
  %v3200 = vmul.f32 %v1077, %v2925
  %v3201 = vmul.f32 %v1078, %v2930
  %v3202 = vmul.f32 %v1079, %v2935
  %v3203 = vmul.f32 %v1080, %v2940
  %v3204 = vmul.f32 %v1081, %v2945
  %v3205 = vmul.f32 %v1082, %v2950
  %v3206 = vmul.f32 %v1083, %v2955
  %v3207 = vmul.f32 %v1084, %v2960
  %v3208 = vmul.f32 %v1085, %v2965
  %v3209 = vmul.f32 %v1086, %v2970
  %v3210 = vmul.f32 %v1087, %v2975
  %v3211 = vmul.f32 %v1088, %v2980
  %v3212 = vmul.f32 %v1089, %v2985
  %v3213 = vmul.f32 %v1090, %v2990
  %v3214 = vmul.f32 %v1091, %v2995
  %v3215 = vmul.f32 %v1092, %v3000
  %v3216 = vmul.f32 %v1093, %v3005
  %v3217 = vmul.f32 %v1094, %v3010
  %v3218 = vmul.f32 %v1095, %v3015
  %v3219 = vmul.f32 %v1096, %v3020
  %v3220 = vmul.f32 %v1097, %v3025
  %v3221 = vmul.f32 %v1098, %v3030
  %v3222 = vmul.f32 %v1099, %v3035
  %v3223 = vmul.f32 %v1100, %v3040
  %v3224 = vmul.f32 %v1101, %v3045
  %v3225 = vmul.f32 %v1102, %v3050
  %v3226 = vmul.f32 %v1103, %v3055
  %v3227 = vmul.f32 %v1104, %v3060
  %v3228 = vadd.f32 %v3188, %v3189
  %v3229 = vadd.f32 %v3228, %v3190
  %v3230 = vadd.f32 %v3229, %v3191
  %v3231 = vadd.f32 %v3230, %v3192
  %v3232 = vadd.f32 %v3231, %v3193
  %v3233 = vadd.f32 %v3232, %v3194
  %v3234 = vadd.f32 %v3233, %v3195
  %v3235 = vadd.f32 %v3234, %v3196
  %v3236 = vadd.f32 %v3235, %v3197
  %v3237 = vadd.f32 %v3236, %v3198
  %v3238 = vadd.f32 %v3237, %v3199
  %v3239 = vadd.f32 %v3238, %v3200
  %v3240 = vadd.f32 %v3239, %v3201
  %v3241 = vadd.f32 %v3240, %v3202
  %v3242 = vadd.f32 %v3241, %v3203
  %v3243 = vadd.f32 %v3242, %v3204
  %v3244 = vadd.f32 %v3243, %v3205
  %v3245 = vadd.f32 %v3244, %v3206
  %v3246 = vadd.f32 %v3245, %v3207
  %v3247 = vadd.f32 %v3246, %v3208
  %v3248 = vadd.f32 %v3247, %v3209
  %v3249 = vadd.f32 %v3248, %v3210
  %v3250 = vadd.f32 %v3249, %v3211
  %v3251 = vadd.f32 %v3250, %v3212
  %v3252 = vadd.f32 %v3251, %v3213
  %v3253 = vadd.f32 %v3252, %v3214
  %v3254 = vadd.f32 %v3253, %v3215
  %v3255 = vadd.f32 %v3254, %v3216
  %v3256 = vadd.f32 %v3255, %v3217
  %v3257 = vadd.f32 %v3256, %v3218
  %v3258 = vadd.f32 %v3257, %v3219
  %v3259 = vadd.f32 %v3258, %v3220
  %v3260 = vadd.f32 %v3259, %v3221
  %v3261 = vadd.f32 %v3260, %v3222
  %v3262 = vadd.f32 %v3261, %v3223
  %v3263 = vadd.f32 %v3262, %v3224
  %v3264 = vadd.f32 %v3263, %v3225
  %v3265 = vadd.f32 %v3264, %v3226
  %v3266 = vadd.f32 %v3265, %v3227
  %v3267 = vrot.slane %v3266, 4
  %v3268 = vadd.f32 %v3266, %v3267
  %v3269 = vrot.slane %v3268, 2
  %v3270 = vadd.f32 %v3268, %v3269
  %v3271 = vrot.slane %v3270, 1
  %v3272 = vadd.f32 %v3270, %v3271
  %v3273 = vlaneseq
  %v3274 = vshrl.u32 %v3273, 7
  %v3275 = vand.u32 %v3274, 1
  %vm3276 = vcmp.eq.s32.totalorder %v3275, 0
  %3278 = vrot.lane.b32.xlu0 %v3187, 127
  %v3279 = vpop.permute.xlu0 %3278
  %v3281 = vsel %vm3276, %v3187, %v3279
  %3283 = vset.pattern.permute.xlu0 0
  %3284 = vperm.xlu0 %3283, %v3281
  %v3285 = vpop.permute.xlu0 %3284
  %v3287 = vsub.f32 %v11, %v3285
  %v3288 = vmax.f32 %v3287, 0.0
  %3289 = vset.pattern.permute.xlu0 4
  %3290 = vperm.xlu0 %3289, %v3281
  %v3291 = vpop.permute.xlu0 %3290
  %v3293 = vmin.f32 %v3291, %v3288
  %3294 = vst [vmem:[%s2] sm:$0x1] %v3272
  %3295 = vst [vmem:[%s2 + $0x1] sm:$0xf] %v3293
  %3296 = vst [vmem:[%s2 + $0x5] sm:$0x1] %v2741
  %3297 = vst [vmem:[%s2 + $0x6] sm:$0x3] 0.0
  // Predicated region
  $region10: #{_device_round.1} parent=0 // pred_check
    _
  $region11: #{_device_round.1} parent=0 // pred_check_branch
    %3299 = sbr.rel (0) target = $region13
  $region12: #{_device_round.1} parent=0 // pred_region
    _
  $region13: #{_device_round.1} parent=0 // pred_fallthru
    _
  // Predicated region
  $region14: #{_device_round.1} parent=0 // pred_check
    _
  $region15: #{_device_round.1} parent=0 // pred_check_branch
    %3301 = sbr.rel (0) target = $region17
  $region16: #{_device_round.1} parent=0 // pred_region
    _
  $region17: #{_device_round.1} parent=0 // pred_fallthru
    _

</llo_original>
